<compile_context>
chip_gen: v7x
topology: tpu7x:2x2x1
jax: 0.10.0
libtpu: 0.0.40
codegen_flags: <defaults>
</compile_context>

<pallas_src>
import functools
import math
from types import SimpleNamespace

import jax
import jax.numpy as jnp
from jax.experimental import pallas as pl
from jax.experimental.pallas import tpu as pltpu


# ------------------------------------------------------------------ kernel --

def _fused_forecast_kernel(patches_ref, w_emb_ref, pos_ref, w_gate_ref,
                           w1_ref, b1_ref, w2_ref, b2_ref,
                           w_head_ref, b_head_ref,
                           dec_ref, aux_ref, head_buf,
                           *, Bnv, P, D, E, H, pred_len, num_gates,
                           balance_coef, z_coef):
    T = Bnv * P
    EH = E * H

    # ---- 1) Patch embedding (bf16 MXU, f32 accumulate) + positional add ----
    emb = jnp.dot(patches_ref[...], w_emb_ref[...],
                  preferred_element_type=jnp.float32)                    # (T, D)
    # Tokens are p-major (t = p*Bnv + g): token t gets pos[p].  Broadcast each
    # pos row across its Bnv-token group and stack along sublanes — no (T, D)
    # pos tile in HBM and no f32 selection matmul.
    pos_full = jnp.concatenate(
        [jnp.broadcast_to(pos_ref[p:p + 1, :], (Bnv, D)) for p in range(P)],
        axis=0)                                                          # (T, D)
    tokens = emb + pos_full                                              # f32
    tokens_bf = tokens.astype(jnp.bfloat16)

    # ---- 2) Router: bf16 gate matmul, f32 softmax + top-k ----
    logits = jnp.dot(tokens_bf, w_gate_ref[...],
                     preferred_element_type=jnp.float32)                 # (T, E)
    lmax = jnp.max(logits, axis=-1, keepdims=True)
    ex = jnp.exp(logits - lmax)
    denom = jnp.sum(ex, axis=-1, keepdims=True)
    # probs only feeds the aux balance loss -> EUP approx reciprocal is fine.
    probs = ex * pl.reciprocal(denom, approx=True)                       # (T, E)

    eidx = jax.lax.broadcasted_iota(jnp.int32, (T, E), 1).astype(jnp.float32)
    neg = jnp.float32(-1e30)
    remaining = ex                        # same ordering as probs (positive scale)
    cw_raw = jnp.zeros((T, E), jnp.float32)
    sel_top1 = None
    for j in range(num_gates):                       # static unroll (k is tiny)
        m = jnp.max(remaining, axis=-1, keepdims=True)
        is_max = remaining >= m
        first = jnp.min(jnp.where(is_max, eidx, jnp.float32(E)),
                        axis=-1, keepdims=True)      # lowest index wins on ties
        sel = eidx == first
        if j == 0:
            sel_top1 = sel
        cw_raw = jnp.where(sel, ex, cw_raw)
        remaining = jnp.where(sel, neg, remaining)
    # Renormalized top-k gates; ex_sel / sum(ex_sel) == probs_sel / sum(probs_sel)
    # exactly, so the full-width softmax divide is never needed on this path.
    cw = cw_raw / jnp.sum(cw_raw, axis=-1, keepdims=True)                # (T, E)

    # ---- 3) MoE experts: single (T, E*H) @ (E*H, D) bf16 matmul ----
    # TODO(synk): dense top-k dispatch (all experts see all tokens); st-moe
    # capacity-factor / threshold token dropping is not replicated.
    h = jnp.dot(tokens_bf, w1_ref[...],
                preferred_element_type=jnp.float32) + b1_ref[...]        # (T, EH)
    # TODO(synk): PyTorch nn.GELU defaults to exact erf; tanh approximation used.
    h = jax.nn.gelu(h, approximate=True)
    # Broadcast gate weight of expert e across its H hidden columns with VPU
    # compares/selects (no reshape, no extra matmul), pre-scale h, then one
    # K = E*H pass through the MXU.
    col = jax.lax.broadcasted_iota(jnp.int32, (T, EH), 1)
    cw_rep = jnp.zeros((T, EH), jnp.float32)
    for e in range(E):                                # static unroll
        in_e = jnp.logical_and(col >= e * H, col < (e + 1) * H)
        cw_rep = jnp.where(in_e, jnp.broadcast_to(cw[:, e:e + 1], (T, EH)),
                           cw_rep)
    hg = (h * cw_rep).astype(jnp.bfloat16)
    moe = jnp.dot(hg, w2_ref[...], preferred_element_type=jnp.float32)   # (T, D)
    moe = moe + jnp.dot(cw, b2_ref[...],
                        preferred_element_type=jnp.float32)              # gated bias

    # ---- 4) FlattenHead: relayout (T, D) -> (Bnv, P*D) through VMEM scratch,
    #          then a single K = P*D bf16 matmul ----
    for p in range(P):                                # static unroll
        head_buf[:, p * D:(p + 1) * D] = moe[p * Bnv:(p + 1) * Bnv, :]
    flat = head_buf[...].astype(jnp.bfloat16)                            # (Bnv, P*D)
    dec_ref[...] = (jnp.dot(flat, w_head_ref[...],
                            preferred_element_type=jnp.float32)
                    + b_head_ref[...])

    # ---- 5) Aux losses (switch-style balance + router z-loss) ----
    top1 = sel_top1.astype(jnp.float32)
    frac = jnp.sum(top1, axis=0, keepdims=True) * (1.0 / T)              # (1, E)
    pbar = jnp.sum(probs, axis=0, keepdims=True) * (1.0 / T)             # (1, E)
    bal = jnp.sum(frac * pbar, axis=-1, keepdims=True) * (E * balance_coef)
    lse = lmax + jnp.log(denom)                                          # (T, 1)
    zl = jnp.sum(lse * lse, axis=0, keepdims=True) * (z_coef / T)
    aux_ref[...] = bal + zl                                              # (1, 1)


def fused_forecast_pallas(patches, params, *, Bnv, P, D, E, H, L, pred_len,
                          num_gates):
    T = Bnv * P
    EH = E * H
    kernel = functools.partial(
        _fused_forecast_kernel, Bnv=Bnv, P=P, D=D, E=E, H=H,
        pred_len=pred_len, num_gates=num_gates,
        balance_coef=0.01, z_coef=0.001)
    # TODO(synk): at production sizes add a token-tile grid axis over the Bnv
    # dimension ("parallel" to use both v7x TensorCores), keep weight index_maps
    # returning (0, ...) so weights stay VMEM-resident, and set vmem_limit_bytes
    # per generation (64 MiB physical on v7x vs 128 MiB on v5e/v6e).
    return pl.pallas_call(
        kernel,
        out_shape=(jax.ShapeDtypeStruct((Bnv, pred_len), jnp.float32),
                   jax.ShapeDtypeStruct((1, 1), jnp.float32)),
        grid=(1,),
        in_specs=[
            pl.BlockSpec((T, L), lambda i: (0, 0)),              # patches (bf16)
            pl.BlockSpec((L, D), lambda i: (0, 0)),              # w_emb (bf16)
            pl.BlockSpec((P, D), lambda i: (0, 0)),              # pos_emb (f32)
            pl.BlockSpec((D, E), lambda i: (0, 0)),              # w_gate (bf16)
            pl.BlockSpec((D, EH), lambda i: (0, 0)),             # w1 concat (bf16)
            pl.BlockSpec((1, EH), lambda i: (0, 0)),             # b1 concat (f32)
            pl.BlockSpec((EH, D), lambda i: (0, 0)),             # w2 concat (bf16)
            pl.BlockSpec((E, D), lambda i: (0, 0)),              # b2 (f32)
            pl.BlockSpec((P * D, pred_len), lambda i: (0, 0)),   # head W (bf16)
            pl.BlockSpec((1, pred_len), lambda i: (0, 0)),       # head b (f32)
        ],
        out_specs=(pl.BlockSpec((Bnv, pred_len), lambda i: (0, 0)),
                   pl.BlockSpec((1, 1), lambda i: (0, 0))),
        scratch_shapes=[pltpu.VMEM((Bnv, P * D), jnp.float32)],
        compiler_params=pltpu.CompilerParams(
            dimension_semantics=("arbitrary",)),
    )(patches, params["w_emb"], params["pos_emb"], params["w_gate"],
      params["w1_cat"], params["b1_cat"], params["w2_cat"], params["b2_mat"],
      params["w_head"], params["b_head"])


# -------------------------------------------------------------- params/glue --

def sinusoidal_pos_emb(num_pos, d_model):
    position = jnp.arange(num_pos, dtype=jnp.float32)[:, None]
    div_term = jnp.exp(jnp.arange(0, d_model, 2, dtype=jnp.float32)
                       * -(math.log(10000.0) / d_model))
    pe = jnp.zeros((num_pos, d_model), jnp.float32)
    pe = pe.at[:, 0::2].set(jnp.sin(position * div_term))
    pe = pe.at[:, 1::2].set(jnp.cos(position * div_term))
    return pe


def _uniform(key, shape, fan_in):
    bound = 1.0 / math.sqrt(fan_in)
    return jax.random.uniform(key, shape, jnp.float32, -bound, bound)


def init_params(key, cfg):
    D = cfg.d_model
    E = cfg.num_experts
    H = D * cfg.moe_hidden_factor
    P = int((cfg.seq_len - cfg.patch_len) / cfg.stride + 2)
    head_nf = D * P
    keys = jax.random.split(key, 8)

    w1 = _uniform(keys[2], (E, D, H), D)           # per-expert (D, H)
    b1 = _uniform(keys[3], (E, H), D)
    w2 = _uniform(keys[4], (E, H, D), H)
    w_head = _uniform(keys[6], (head_nf, cfg.pred_len), head_nf)  # flat idx d*P+p

    params = dict(
        # bf16 weights on every MXU hot path; f32 biases / positional table.
        w_emb=_uniform(keys[0], (cfg.patch_len, D),
                       cfg.patch_len).astype(jnp.bfloat16),
        pos_emb=sinusoidal_pos_emb(P, D),                                  # (P, D)
        w_gate=_uniform(keys[1], (D, E), D).astype(jnp.bfloat16),
        # experts: W1 concatenated along the output dim -> (D, E*H)
        w1_cat=jnp.transpose(w1, (1, 0, 2)).reshape(D, E * H).astype(jnp.bfloat16),
        b1_cat=b1.reshape(1, E * H),
        # experts: W2 concatenated along the input dim -> (E*H, D)
        w2_cat=w2.reshape(E * H, D).astype(jnp.bfloat16),
        b2_mat=_uniform(keys[5], (E, D), H),
        # FlattenHead weight flattened to (P*D, pred): W[p*D+d, o] = W_io[d*P+p, o]
        w_head=jnp.transpose(w_head.reshape(D, P, cfg.pred_len),
                             (1, 0, 2)).reshape(P * D, cfg.pred_len
                                                ).astype(jnp.bfloat16),
        b_head=_uniform(keys[7], (1, cfg.pred_len), head_nf),
    )
    return params, P


def forward(params, cfg, P, x_enc):
    B, S, nv = x_enc.shape
    D = cfg.d_model
    E = cfg.num_experts
    H = D * cfg.moe_hidden_factor
    Bnv = B * nv

    # --- use_norm (RevIN-style, unbiased=False variance) ---
    means = jnp.mean(x_enc, axis=1, keepdims=True)
    xc = x_enc - means
    stdev = jnp.sqrt(jnp.var(xc, axis=1, keepdims=True) + 1e-5)
    xn = xc / stdev

    # --- patch construction (ReplicationPad1d + unfold), cheap JAX glue ---
    x = jnp.transpose(xn, (0, 2, 1))                                   # (B, nv, S)
    x = jnp.pad(x, ((0, 0), (0, 0), (0, cfg.stride)), mode="edge")
    starts = jnp.arange(P) * cfg.stride
    idx = starts[:, None] + jnp.arange(cfg.patch_len)[None, :]
    patches = x[:, :, idx]                                             # (B, nv, P, L)
    # p-major token order (t = p*Bnv + b*nv + v): the fused head then only needs
    # static contiguous row-block slices of the resident MoE tile.
    patches = jnp.transpose(patches, (2, 0, 1, 3)).reshape(P * Bnv, cfg.patch_len)
    patches = patches.astype(jnp.bfloat16)        # halve the activation DMA

    dec, aux = fused_forecast_pallas(
        patches, params, Bnv=Bnv, P=P, D=D, E=E, H=H, L=cfg.patch_len,
        pred_len=cfg.pred_len, num_gates=cfg.num_gates)

    dec = dec.reshape(B, nv, cfg.pred_len)
    dec = jnp.transpose(dec, (0, 2, 1))                                # (B, pred, nv)
    dec = dec * stdev[:, 0, :][:, None, :] + means[:, 0, :][:, None, :]
    return dec[:, -cfg.pred_len:, :], aux[0, 0]


# --------------------------------------------------------------------- main --

if __name__ == "__main__":
    cfg = SimpleNamespace(
        task_name="long_term_forecast",
        seq_len=64, pred_len=16,
        enc_in=4, c_out=4,
        d_model=32, dropout=0.0, use_norm=1,
        num_experts=4, num_gates=2, moe_hidden_factor=2,
        patch_len=16, stride=8,
    )
    key = jax.random.PRNGKey(0)
    k_param, k_x = jax.random.split(key)
    params, num_patches = init_params(k_param, cfg)

    B = 2
    x_enc = jax.random.normal(k_x, (B, cfg.seq_len, cfg.enc_in), jnp.float32)
    # x_mark_enc / x_dec / x_mark_dec are unused on the forecast path.

    fwd = jax.jit(lambda p, x: forward(p, cfg, num_patches, x))
    dec_out, total_aux_loss = fwd(params, x_enc)
    dec_out, total_aux_loss = jax.block_until_ready((dec_out, total_aux_loss))

    assert dec_out.shape == (B, cfg.pred_len, cfg.enc_in), dec_out.shape
    assert bool(jnp.all(jnp.isfinite(dec_out))) and bool(jnp.isfinite(total_aux_loss))
    print("KERNEL_OK")
</pallas_src>

<mosaic_0001>
module attributes {stable_mosaic.version = 11 : i64} {
  func.func @_fused_forecast_kernel(%arg0: i32, %arg1: memref<64x16xbf16, #tpu.memory_space<vmem>>, %arg2: memref<16x32xbf16, #tpu.memory_space<vmem>>, %arg3: memref<8x32xf32, #tpu.memory_space<vmem>>, %arg4: memref<32x4xbf16, #tpu.memory_space<vmem>>, %arg5: memref<32x256xbf16, #tpu.memory_space<vmem>>, %arg6: memref<1x256xf32, #tpu.memory_space<vmem>>, %arg7: memref<256x32xbf16, #tpu.memory_space<vmem>>, %arg8: memref<4x32xf32, #tpu.memory_space<vmem>>, %arg9: memref<256x16xbf16, #tpu.memory_space<vmem>>, %arg10: memref<1x16xf32, #tpu.memory_space<vmem>>, %arg11: memref<8x16xf32, #tpu.memory_space<vmem>>, %arg12: memref<1x1xf32, #tpu.memory_space<vmem>>, %arg13: memref<8x256xf32, #tpu.memory_space<vmem>>) attributes {dimension_semantics = [#tpu.dimension_semantics<arbitrary>], iteration_bounds = array<i64: 1>, scalar_prefetch = 0 : i64, scratch_operands = 1 : i64, tpu.core_type = #tpu.core_type<tc>, window_params = [{pipeline_mode = #tpu.pipeline_mode<synchronous>, transform_indices = @transform_0, window_bounds = array<i64: 64, 16>}, {pipeline_mode = #tpu.pipeline_mode<synchronous>, transform_indices = @transform_1, window_bounds = array<i64: 16, 32>}, {pipeline_mode = #tpu.pipeline_mode<synchronous>, transform_indices = @transform_2, window_bounds = array<i64: 8, 32>}, {pipeline_mode = #tpu.pipeline_mode<synchronous>, transform_indices = @transform_3, window_bounds = array<i64: 32, 4>}, {pipeline_mode = #tpu.pipeline_mode<synchronous>, transform_indices = @transform_4, window_bounds = array<i64: 32, 256>}, {pipeline_mode = #tpu.pipeline_mode<synchronous>, transform_indices = @transform_5, window_bounds = array<i64: 1, 256>}, {pipeline_mode = #tpu.pipeline_mode<synchronous>, transform_indices = @transform_6, window_bounds = array<i64: 256, 32>}, {pipeline_mode = #tpu.pipeline_mode<synchronous>, transform_indices = @transform_7, window_bounds = array<i64: 4, 32>}, {pipeline_mode = #tpu.pipeline_mode<synchronous>, transform_indices = @transform_8, window_bounds = array<i64: 256, 16>}, {pipeline_mode = #tpu.pipeline_mode<synchronous>, transform_indices = @transform_9, window_bounds = array<i64: 1, 16>}, {pipeline_mode = #tpu.pipeline_mode<synchronous>, transform_indices = @transform_10, window_bounds = array<i64: 8, 16>}, {pipeline_mode = #tpu.pipeline_mode<synchronous>, transform_indices = @transform_11, window_bounds = array<i64: 1, 1>}]} {
    %c0 = arith.constant 0 : index
    %c0_0 = arith.constant 0 : index
    %0 = vector.load %arg1[%c0, %c0_0] : memref<64x16xbf16, #tpu.memory_space<vmem>>, vector<64x16xbf16>
    %c0_1 = arith.constant 0 : index
    %c0_2 = arith.constant 0 : index
    %1 = vector.load %arg2[%c0_1, %c0_2] : memref<16x32xbf16, #tpu.memory_space<vmem>>, vector<16x32xbf16>
    %cst = arith.constant dense<0.000000e+00> : vector<64x32xf32>
    %2 = tpu.matmul %0, %1, %cst {dimension_numbers = #tpu.dot_dimension_numbers<[1], [0], [0], [1], [0, 0, 1, 1], [], []>} : vector<64x16xbf16>, vector<16x32xbf16>, vector<64x32xf32> -> vector<64x32xf32>
    %c0_3 = arith.constant 0 : index
    %c0_4 = arith.constant 0 : index
    %3 = vector.load %arg3[%c0_3, %c0_4] : memref<8x32xf32, #tpu.memory_space<vmem>>, vector<1x32xf32>
    %4 = vector.shape_cast %3 : vector<1x32xf32> to vector<1x32xf32>
    %5 = vector.broadcast %4 : vector<1x32xf32> to vector<8x32xf32>
    %c1 = arith.constant 1 : index
    %c0_5 = arith.constant 0 : index
    %6 = vector.load %arg3[%c1, %c0_5] : memref<8x32xf32, #tpu.memory_space<vmem>>, vector<1x32xf32>
    %7 = vector.shape_cast %6 : vector<1x32xf32> to vector<1x32xf32>
    %8 = vector.broadcast %7 : vector<1x32xf32> to vector<8x32xf32>
    %c2 = arith.constant 2 : index
    %c0_6 = arith.constant 0 : index
    %9 = vector.load %arg3[%c2, %c0_6] : memref<8x32xf32, #tpu.memory_space<vmem>>, vector<1x32xf32>
    %10 = vector.shape_cast %9 : vector<1x32xf32> to vector<1x32xf32>
    %11 = vector.broadcast %10 : vector<1x32xf32> to vector<8x32xf32>
    %c3 = arith.constant 3 : index
    %c0_7 = arith.constant 0 : index
    %12 = vector.load %arg3[%c3, %c0_7] : memref<8x32xf32, #tpu.memory_space<vmem>>, vector<1x32xf32>
    %13 = vector.shape_cast %12 : vector<1x32xf32> to vector<1x32xf32>
    %14 = vector.broadcast %13 : vector<1x32xf32> to vector<8x32xf32>
    %c4 = arith.constant 4 : index
    %c0_8 = arith.constant 0 : index
    %15 = vector.load %arg3[%c4, %c0_8] : memref<8x32xf32, #tpu.memory_space<vmem>>, vector<1x32xf32>
    %16 = vector.shape_cast %15 : vector<1x32xf32> to vector<1x32xf32>
    %17 = vector.broadcast %16 : vector<1x32xf32> to vector<8x32xf32>
    %c5 = arith.constant 5 : index
    %c0_9 = arith.constant 0 : index
    %18 = vector.load %arg3[%c5, %c0_9] : memref<8x32xf32, #tpu.memory_space<vmem>>, vector<1x32xf32>
    %19 = vector.shape_cast %18 : vector<1x32xf32> to vector<1x32xf32>
    %20 = vector.broadcast %19 : vector<1x32xf32> to vector<8x32xf32>
    %c6 = arith.constant 6 : index
    %c0_10 = arith.constant 0 : index
    %21 = vector.load %arg3[%c6, %c0_10] : memref<8x32xf32, #tpu.memory_space<vmem>>, vector<1x32xf32>
    %22 = vector.shape_cast %21 : vector<1x32xf32> to vector<1x32xf32>
    %23 = vector.broadcast %22 : vector<1x32xf32> to vector<8x32xf32>
    %c7 = arith.constant 7 : index
    %c0_11 = arith.constant 0 : index
    %24 = vector.load %arg3[%c7, %c0_11] : memref<8x32xf32, #tpu.memory_space<vmem>>, vector<1x32xf32>
    %25 = vector.shape_cast %24 : vector<1x32xf32> to vector<1x32xf32>
    %26 = vector.broadcast %25 : vector<1x32xf32> to vector<8x32xf32>
    %27 = tpu.concatenate %5, %8, %11, %14, %17, %20, %23, %26 in 0 : vector<8x32xf32>, vector<8x32xf32>, vector<8x32xf32>, vector<8x32xf32>, vector<8x32xf32>, vector<8x32xf32>, vector<8x32xf32>, vector<8x32xf32> -> vector<64x32xf32>
    %28 = arith.addf %2, %27 : vector<64x32xf32>
    %29 = arith.truncf %28 : vector<64x32xf32> to vector<64x32xbf16>
    %c0_12 = arith.constant 0 : index
    %c0_13 = arith.constant 0 : index
    %30 = vector.load %arg4[%c0_12, %c0_13] : memref<32x4xbf16, #tpu.memory_space<vmem>>, vector<32x4xbf16>
    %cst_14 = arith.constant dense<0.000000e+00> : vector<64x4xf32>
    %31 = tpu.matmul %29, %30, %cst_14 {dimension_numbers = #tpu.dot_dimension_numbers<[1], [0], [0], [1], [0, 0, 1, 1], [], []>} : vector<64x32xbf16>, vector<32x4xbf16>, vector<64x4xf32> -> vector<64x4xf32>
    %cst_15 = arith.constant dense<0xFF800000> : vector<64xf32>
    %32 = vector.multi_reduction <maximumf>, %31, %cst_15 [1] : vector<64x4xf32> to vector<64xf32>
    %33 = vector.shape_cast %32 : vector<64xf32> to vector<64x1xf32>
    %34 = vector.broadcast %33 : vector<64x1xf32> to vector<64x4xf32>
    %35 = arith.subf %31, %34 : vector<64x4xf32>
    %36 = math.exp %35 : vector<64x4xf32>
    %cst_16 = arith.constant dense<0.000000e+00> : vector<64xf32>
    %37 = vector.multi_reduction <add>, %36, %cst_16 [1] : vector<64x4xf32> to vector<64xf32>
    %38 = vector.shape_cast %37 : vector<64xf32> to vector<64x1xf32>
    %39 = tpu.reciprocal %38 {approx = true} : vector<64x1xf32> -> vector<64x1xf32>
    %40 = vector.broadcast %39 : vector<64x1xf32> to vector<64x4xf32>
    %41 = arith.mulf %36, %40 : vector<64x4xf32>
    %42 = tpu.iota {dimensions = array<i32: 1>} : vector<64x4xi32>
    %43 = arith.sitofp %42 : vector<64x4xi32> to vector<64x4xf32>
    %cst_17 = arith.constant 0.000000e+00 : f32
    %44 = vector.broadcast %cst_17 : f32 to vector<64x4xf32>
    %cst_18 = arith.constant dense<0xFF800000> : vector<64xf32>
    %45 = vector.multi_reduction <maximumf>, %36, %cst_18 [1] : vector<64x4xf32> to vector<64xf32>
    %46 = vector.shape_cast %45 : vector<64xf32> to vector<64x1xf32>
    %47 = vector.broadcast %46 : vector<64x1xf32> to vector<64x4xf32>
    %48 = arith.cmpf oge, %36, %47 : vector<64x4xf32>
    %cst_19 = arith.constant 4.000000e+00 : f32
    %49 = vector.broadcast %cst_19 : f32 to vector<64x4xf32>
    %50 = arith.select %48, %43, %49 : vector<64x4xi1>, vector<64x4xf32>
    %cst_20 = arith.constant dense<0x7F800000> : vector<64xf32>
    %51 = vector.multi_reduction <minimumf>, %50, %cst_20 [1] : vector<64x4xf32> to vector<64xf32>
    %52 = vector.shape_cast %51 : vector<64xf32> to vector<64x1xf32>
    %53 = vector.broadcast %52 : vector<64x1xf32> to vector<64x4xf32>
    %54 = arith.cmpf oeq, %43, %53 : vector<64x4xf32>
    %55 = arith.select %54, %36, %44 : vector<64x4xi1>, vector<64x4xf32>
    %cst_21 = arith.constant -1.000000e+30 : f32
    %56 = vector.broadcast %cst_21 : f32 to vector<64x4xf32>
    %57 = arith.select %54, %56, %36 : vector<64x4xi1>, vector<64x4xf32>
    %cst_22 = arith.constant dense<0xFF800000> : vector<64xf32>
    %58 = vector.multi_reduction <maximumf>, %57, %cst_22 [1] : vector<64x4xf32> to vector<64xf32>
    %59 = vector.shape_cast %58 : vector<64xf32> to vector<64x1xf32>
    %60 = vector.broadcast %59 : vector<64x1xf32> to vector<64x4xf32>
    %61 = arith.cmpf oge, %57, %60 : vector<64x4xf32>
    %cst_23 = arith.constant 4.000000e+00 : f32
    %62 = vector.broadcast %cst_23 : f32 to vector<64x4xf32>
    %63 = arith.select %61, %43, %62 : vector<64x4xi1>, vector<64x4xf32>
    %cst_24 = arith.constant dense<0x7F800000> : vector<64xf32>
    %64 = vector.multi_reduction <minimumf>, %63, %cst_24 [1] : vector<64x4xf32> to vector<64xf32>
    %65 = vector.shape_cast %64 : vector<64xf32> to vector<64x1xf32>
    %66 = vector.broadcast %65 : vector<64x1xf32> to vector<64x4xf32>
    %67 = arith.cmpf oeq, %43, %66 : vector<64x4xf32>
    %68 = arith.select %67, %36, %55 : vector<64x4xi1>, vector<64x4xf32>
    %cst_25 = arith.constant dense<0.000000e+00> : vector<64xf32>
    %69 = vector.multi_reduction <add>, %68, %cst_25 [1] : vector<64x4xf32> to vector<64xf32>
    %70 = vector.shape_cast %69 : vector<64xf32> to vector<64x1xf32>
    %71 = vector.broadcast %70 : vector<64x1xf32> to vector<64x4xf32>
    %72 = arith.divf %68, %71 : vector<64x4xf32>
    %c0_26 = arith.constant 0 : index
    %c0_27 = arith.constant 0 : index
    %73 = vector.load %arg5[%c0_26, %c0_27] : memref<32x256xbf16, #tpu.memory_space<vmem>>, vector<32x256xbf16>
    %cst_28 = arith.constant dense<0.000000e+00> : vector<64x256xf32>
    %74 = tpu.matmul %29, %73, %cst_28 {dimension_numbers = #tpu.dot_dimension_numbers<[1], [0], [0], [1], [0, 0, 1, 1], [], []>} : vector<64x32xbf16>, vector<32x256xbf16>, vector<64x256xf32> -> vector<64x256xf32>
    %c0_29 = arith.constant 0 : index
    %c0_30 = arith.constant 0 : index
    %75 = vector.load %arg6[%c0_29, %c0_30] : memref<1x256xf32, #tpu.memory_space<vmem>>, vector<1x256xf32>
    %76 = vector.broadcast %75 : vector<1x256xf32> to vector<64x256xf32>
    %77 = arith.addf %74, %76 : vector<64x256xf32>
    %78 = arith.mulf %77, %77 : vector<64x256xf32>
    %79 = arith.mulf %77, %78 : vector<64x256xf32>
    %cst_31 = arith.constant 4.471500e-02 : f32
    %80 = vector.broadcast %cst_31 : f32 to vector<64x256xf32>
    %81 = arith.mulf %80, %79 : vector<64x256xf32>
    %82 = arith.addf %77, %81 : vector<64x256xf32>
    %cst_32 = arith.constant 0.797884583 : f32
    %83 = vector.broadcast %cst_32 : f32 to vector<64x256xf32>
    %84 = arith.mulf %83, %82 : vector<64x256xf32>
    %85 = math.tanh %84 : vector<64x256xf32>
    %cst_33 = arith.constant 1.000000e+00 : f32
    %86 = vector.broadcast %cst_33 : f32 to vector<64x256xf32>
    %87 = arith.addf %86, %85 : vector<64x256xf32>
    %cst_34 = arith.constant 5.000000e-01 : f32
    %88 = vector.broadcast %cst_34 : f32 to vector<64x256xf32>
    %89 = arith.mulf %88, %87 : vector<64x256xf32>
    %90 = arith.mulf %77, %89 : vector<64x256xf32>
    %91 = tpu.iota {dimensions = array<i32: 1>} : vector<64x256xi32>
    %cst_35 = arith.constant 0.000000e+00 : f32
    %92 = vector.broadcast %cst_35 : f32 to vector<64x256xf32>
    %c0_i32 = arith.constant 0 : i32
    %93 = vector.broadcast %c0_i32 : i32 to vector<64x256xi32>
    %94 = arith.cmpi sge, %91, %93 : vector<64x256xi32>
    %c64_i32 = arith.constant 64 : i32
    %95 = vector.broadcast %c64_i32 : i32 to vector<64x256xi32>
    %96 = arith.cmpi slt, %91, %95 : vector<64x256xi32>
    %97 = arith.andi %94, %96 : vector<64x256xi1>
    %98 = vector.extract_strided_slice %72 {offsets = [0, 0], sizes = [64, 1], strides = [1, 1]} : vector<64x4xf32> to vector<64x1xf32>
    %99 = vector.shape_cast %98 : vector<64x1xf32> to vector<64x1xf32>
    %100 = vector.broadcast %99 : vector<64x1xf32> to vector<64x256xf32>
    %101 = arith.select %97, %100, %92 : vector<64x256xi1>, vector<64x256xf32>
    %c64_i32_36 = arith.constant 64 : i32
    %102 = vector.broadcast %c64_i32_36 : i32 to vector<64x256xi32>
    %103 = arith.cmpi sge, %91, %102 : vector<64x256xi32>
    %c128_i32 = arith.constant 128 : i32
    %104 = vector.broadcast %c128_i32 : i32 to vector<64x256xi32>
    %105 = arith.cmpi slt, %91, %104 : vector<64x256xi32>
    %106 = arith.andi %103, %105 : vector<64x256xi1>
    %107 = vector.extract_strided_slice %72 {offsets = [0, 1], sizes = [64, 1], strides = [1, 1]} : vector<64x4xf32> to vector<64x1xf32>
    %108 = vector.shape_cast %107 : vector<64x1xf32> to vector<64x1xf32>
    %109 = vector.broadcast %108 : vector<64x1xf32> to vector<64x256xf32>
    %110 = arith.select %106, %109, %101 : vector<64x256xi1>, vector<64x256xf32>
    %c128_i32_37 = arith.constant 128 : i32
    %111 = vector.broadcast %c128_i32_37 : i32 to vector<64x256xi32>
    %112 = arith.cmpi sge, %91, %111 : vector<64x256xi32>
    %c192_i32 = arith.constant 192 : i32
    %113 = vector.broadcast %c192_i32 : i32 to vector<64x256xi32>
    %114 = arith.cmpi slt, %91, %113 : vector<64x256xi32>
    %115 = arith.andi %112, %114 : vector<64x256xi1>
    %116 = vector.extract_strided_slice %72 {offsets = [0, 2], sizes = [64, 1], strides = [1, 1]} : vector<64x4xf32> to vector<64x1xf32>
    %117 = vector.shape_cast %116 : vector<64x1xf32> to vector<64x1xf32>
    %118 = vector.broadcast %117 : vector<64x1xf32> to vector<64x256xf32>
    %119 = arith.select %115, %118, %110 : vector<64x256xi1>, vector<64x256xf32>
    %c192_i32_38 = arith.constant 192 : i32
    %120 = vector.broadcast %c192_i32_38 : i32 to vector<64x256xi32>
    %121 = arith.cmpi sge, %91, %120 : vector<64x256xi32>
    %c256_i32 = arith.constant 256 : i32
    %122 = vector.broadcast %c256_i32 : i32 to vector<64x256xi32>
    %123 = arith.cmpi slt, %91, %122 : vector<64x256xi32>
    %124 = arith.andi %121, %123 : vector<64x256xi1>
    %125 = vector.extract_strided_slice %72 {offsets = [0, 3], sizes = [64, 1], strides = [1, 1]} : vector<64x4xf32> to vector<64x1xf32>
    %126 = vector.shape_cast %125 : vector<64x1xf32> to vector<64x1xf32>
    %127 = vector.broadcast %126 : vector<64x1xf32> to vector<64x256xf32>
    %128 = arith.select %124, %127, %119 : vector<64x256xi1>, vector<64x256xf32>
    %129 = arith.mulf %90, %128 : vector<64x256xf32>
    %130 = arith.truncf %129 : vector<64x256xf32> to vector<64x256xbf16>
    %c0_39 = arith.constant 0 : index
    %c0_40 = arith.constant 0 : index
    %131 = vector.load %arg7[%c0_39, %c0_40] : memref<256x32xbf16, #tpu.memory_space<vmem>>, vector<256x32xbf16>
    %cst_41 = arith.constant dense<0.000000e+00> : vector<64x32xf32>
    %132 = tpu.matmul %130, %131, %cst_41 {dimension_numbers = #tpu.dot_dimension_numbers<[1], [0], [0], [1], [0, 0, 1, 1], [], []>} : vector<64x256xbf16>, vector<256x32xbf16>, vector<64x32xf32> -> vector<64x32xf32>
    %c0_42 = arith.constant 0 : index
    %c0_43 = arith.constant 0 : index
    %133 = vector.load %arg8[%c0_42, %c0_43] : memref<4x32xf32, #tpu.memory_space<vmem>>, vector<4x32xf32>
    %cst_44 = arith.constant dense<0.000000e+00> : vector<64x32xf32>
    %134 = tpu.matmul %72, %133, %cst_44 {dimension_numbers = #tpu.dot_dimension_numbers<[1], [0], [0], [1], [0, 0, 1, 1], [], []>} : vector<64x4xf32>, vector<4x32xf32>, vector<64x32xf32> -> vector<64x32xf32>
    %135 = arith.addf %132, %134 : vector<64x32xf32>
    %136 = vector.extract_strided_slice %135 {offsets = [0, 0], sizes = [8, 32], strides = [1, 1]} : vector<64x32xf32> to vector<8x32xf32>
    %c0_45 = arith.constant 0 : index
    %c0_46 = arith.constant 0 : index
    %137 = vector.load %arg13[%c0_45, %c0_46] : memref<8x256xf32, #tpu.memory_space<vmem>>, vector<8x32xf32>
    tpu.vector_store %arg13[%c0_45, %c0_46], %136 {strides = array<i32>} : memref<8x256xf32, #tpu.memory_space<vmem>>, vector<8x32xf32>,
    %138 = vector.extract_strided_slice %135 {offsets = [8, 0], sizes = [8, 32], strides = [1, 1]} : vector<64x32xf32> to vector<8x32xf32>
    %c0_47 = arith.constant 0 : index
    %c32 = arith.constant 32 : index
    %139 = vector.load %arg13[%c0_47, %c32] : memref<8x256xf32, #tpu.memory_space<vmem>>, vector<8x32xf32>
    tpu.vector_store %arg13[%c0_47, %c32], %138 {strides = array<i32>} : memref<8x256xf32, #tpu.memory_space<vmem>>, vector<8x32xf32>,
    %140 = vector.extract_strided_slice %135 {offsets = [16, 0], sizes = [8, 32], strides = [1, 1]} : vector<64x32xf32> to vector<8x32xf32>
    %c0_48 = arith.constant 0 : index
    %c64 = arith.constant 64 : index
    %141 = vector.load %arg13[%c0_48, %c64] : memref<8x256xf32, #tpu.memory_space<vmem>>, vector<8x32xf32>
    tpu.vector_store %arg13[%c0_48, %c64], %140 {strides = array<i32>} : memref<8x256xf32, #tpu.memory_space<vmem>>, vector<8x32xf32>,
    %142 = vector.extract_strided_slice %135 {offsets = [24, 0], sizes = [8, 32], strides = [1, 1]} : vector<64x32xf32> to vector<8x32xf32>
    %c0_49 = arith.constant 0 : index
    %c96 = arith.constant 96 : index
    %143 = vector.load %arg13[%c0_49, %c96] : memref<8x256xf32, #tpu.memory_space<vmem>>, vector<8x32xf32>
    tpu.vector_store %arg13[%c0_49, %c96], %142 {strides = array<i32>} : memref<8x256xf32, #tpu.memory_space<vmem>>, vector<8x32xf32>,
    %144 = vector.extract_strided_slice %135 {offsets = [32, 0], sizes = [8, 32], strides = [1, 1]} : vector<64x32xf32> to vector<8x32xf32>
    %c0_50 = arith.constant 0 : index
    %c128 = arith.constant 128 : index
    %145 = vector.load %arg13[%c0_50, %c128] : memref<8x256xf32, #tpu.memory_space<vmem>>, vector<8x32xf32>
    tpu.vector_store %arg13[%c0_50, %c128], %144 {strides = array<i32>} : memref<8x256xf32, #tpu.memory_space<vmem>>, vector<8x32xf32>,
    %146 = vector.extract_strided_slice %135 {offsets = [40, 0], sizes = [8, 32], strides = [1, 1]} : vector<64x32xf32> to vector<8x32xf32>
    %c0_51 = arith.constant 0 : index
    %c160 = arith.constant 160 : index
    %147 = vector.load %arg13[%c0_51, %c160] : memref<8x256xf32, #tpu.memory_space<vmem>>, vector<8x32xf32>
    tpu.vector_store %arg13[%c0_51, %c160], %146 {strides = array<i32>} : memref<8x256xf32, #tpu.memory_space<vmem>>, vector<8x32xf32>,
    %148 = vector.extract_strided_slice %135 {offsets = [48, 0], sizes = [8, 32], strides = [1, 1]} : vector<64x32xf32> to vector<8x32xf32>
    %c0_52 = arith.constant 0 : index
    %c192 = arith.constant 192 : index
    %149 = vector.load %arg13[%c0_52, %c192] : memref<8x256xf32, #tpu.memory_space<vmem>>, vector<8x32xf32>
    tpu.vector_store %arg13[%c0_52, %c192], %148 {strides = array<i32>} : memref<8x256xf32, #tpu.memory_space<vmem>>, vector<8x32xf32>,
    %150 = vector.extract_strided_slice %135 {offsets = [56, 0], sizes = [8, 32], strides = [1, 1]} : vector<64x32xf32> to vector<8x32xf32>
    %c0_53 = arith.constant 0 : index
    %c224 = arith.constant 224 : index
    %151 = vector.load %arg13[%c0_53, %c224] : memref<8x256xf32, #tpu.memory_space<vmem>>, vector<8x32xf32>
    tpu.vector_store %arg13[%c0_53, %c224], %150 {strides = array<i32>} : memref<8x256xf32, #tpu.memory_space<vmem>>, vector<8x32xf32>,
    %c0_54 = arith.constant 0 : index
    %c0_55 = arith.constant 0 : index
    %152 = vector.load %arg13[%c0_54, %c0_55] : memref<8x256xf32, #tpu.memory_space<vmem>>, vector<8x256xf32>
    %153 = arith.truncf %152 : vector<8x256xf32> to vector<8x256xbf16>
    %c0_56 = arith.constant 0 : index
    %c0_57 = arith.constant 0 : index
    %154 = vector.load %arg9[%c0_56, %c0_57] : memref<256x16xbf16, #tpu.memory_space<vmem>>, vector<256x16xbf16>
    %cst_58 = arith.constant dense<0.000000e+00> : vector<8x16xf32>
    %155 = tpu.matmul %153, %154, %cst_58 {dimension_numbers = #tpu.dot_dimension_numbers<[1], [0], [0], [1], [0, 0, 1, 1], [], []>} : vector<8x256xbf16>, vector<256x16xbf16>, vector<8x16xf32> -> vector<8x16xf32>
    %c0_59 = arith.constant 0 : index
    %c0_60 = arith.constant 0 : index
    %156 = vector.load %arg10[%c0_59, %c0_60] : memref<1x16xf32, #tpu.memory_space<vmem>>, vector<1x16xf32>
    %157 = vector.broadcast %156 : vector<1x16xf32> to vector<8x16xf32>
    %158 = arith.addf %155, %157 : vector<8x16xf32>
    %c0_61 = arith.constant 0 : index
    %c0_62 = arith.constant 0 : index
    %159 = vector.load %arg11[%c0_61, %c0_62] : memref<8x16xf32, #tpu.memory_space<vmem>>, vector<8x16xf32>
    tpu.vector_store %arg11[%c0_61, %c0_62], %158 {strides = array<i32>} : memref<8x16xf32, #tpu.memory_space<vmem>>, vector<8x16xf32>,
    %160 = arith.extui %54 : vector<64x4xi1> to vector<64x4xi32>
    %161 = arith.sitofp %160 : vector<64x4xi32> to vector<64x4xf32>
    %cst_63 = arith.constant dense<0.000000e+00> : vector<4xf32>
    %162 = vector.multi_reduction <add>, %161, %cst_63 [0] : vector<64x4xf32> to vector<4xf32>
    %163 = vector.shape_cast %162 : vector<4xf32> to vector<1x4xf32>
    %cst_64 = arith.constant 1.562500e-02 : f32
    %164 = vector.broadcast %cst_64 : f32 to vector<1x4xf32>
    %165 = arith.mulf %163, %164 : vector<1x4xf32>
    %cst_65 = arith.constant dense<0.000000e+00> : vector<4xf32>
    %166 = vector.multi_reduction <add>, %41, %cst_65 [0] : vector<64x4xf32> to vector<4xf32>
    %167 = vector.shape_cast %166 : vector<4xf32> to vector<1x4xf32>
    %cst_66 = arith.constant 1.562500e-02 : f32
    %168 = vector.broadcast %cst_66 : f32 to vector<1x4xf32>
    %169 = arith.mulf %167, %168 : vector<1x4xf32>
    %170 = arith.mulf %165, %169 : vector<1x4xf32>
    %cst_67 = arith.constant dense<0.000000e+00> : vector<1xf32>
    %171 = vector.multi_reduction <add>, %170, %cst_67 [1] : vector<1x4xf32> to vector<1xf32>
    %172 = vector.shape_cast %171 : vector<1xf32> to vector<1x1xf32>
    %cst_68 = arith.constant 4.000000e-02 : f32
    %173 = vector.broadcast %cst_68 : f32 to vector<1x1xf32>
    %174 = arith.mulf %172, %173 : vector<1x1xf32>
    %175 = math.log %38 : vector<64x1xf32>
    %176 = arith.addf %33, %175 : vector<64x1xf32>
    %177 = arith.mulf %176, %176 : vector<64x1xf32>
    %cst_69 = arith.constant dense<0.000000e+00> : vector<1xf32>
    %178 = vector.multi_reduction <add>, %177, %cst_69 [0] : vector<64x1xf32> to vector<1xf32>
    %179 = vector.shape_cast %178 : vector<1xf32> to vector<1x1xf32>
    %cst_70 = arith.constant 1.562500e-05 : f32
    %180 = vector.broadcast %cst_70 : f32 to vector<1x1xf32>
    %181 = arith.mulf %179, %180 : vector<1x1xf32>
    %182 = arith.addf %174, %181 : vector<1x1xf32>
    %c0_71 = arith.constant 0 : index
    %c0_72 = arith.constant 0 : index
    %183 = vector.load %arg12[%c0_71, %c0_72] : memref<1x1xf32, #tpu.memory_space<vmem>>, vector<1x1xf32>
    tpu.vector_store %arg12[%c0_71, %c0_72], %182 {strides = array<i32>} : memref<1x1xf32, #tpu.memory_space<vmem>>, vector<1x1xf32>,
    return
  }
  func.func @transform_0(%arg0: i32) -> (i32, i32) {
    %c0_i32 = arith.constant 0 : i32
    %c0_i32_0 = arith.constant 0 : i32
    %c0_i32_1 = arith.constant 0 : i32
    return %c0_i32, %c0_i32_0 : i32, i32
  }
  func.func @transform_1(%arg0: i32) -> (i32, i32) {
    %c0_i32 = arith.constant 0 : i32
    %c0_i32_0 = arith.constant 0 : i32
    %c0_i32_1 = arith.constant 0 : i32
    return %c0_i32, %c0_i32_0 : i32, i32
  }
  func.func @transform_2(%arg0: i32) -> (i32, i32) {
    %c0_i32 = arith.constant 0 : i32
    %c0_i32_0 = arith.constant 0 : i32
    %c0_i32_1 = arith.constant 0 : i32
    return %c0_i32, %c0_i32_0 : i32, i32
  }
  func.func @transform_3(%arg0: i32) -> (i32, i32) {
    %c0_i32 = arith.constant 0 : i32
    %c0_i32_0 = arith.constant 0 : i32
    %c0_i32_1 = arith.constant 0 : i32
    return %c0_i32, %c0_i32_0 : i32, i32
  }
  func.func @transform_4(%arg0: i32) -> (i32, i32) {
    %c0_i32 = arith.constant 0 : i32
    %c0_i32_0 = arith.constant 0 : i32
    %c0_i32_1 = arith.constant 0 : i32
    return %c0_i32, %c0_i32_0 : i32, i32
  }
  func.func @transform_5(%arg0: i32) -> (i32, i32) {
    %c0_i32 = arith.constant 0 : i32
    %c0_i32_0 = arith.constant 0 : i32
    %c0_i32_1 = arith.constant 0 : i32
    return %c0_i32, %c0_i32_0 : i32, i32
  }
  func.func @transform_6(%arg0: i32) -> (i32, i32) {
    %c0_i32 = arith.constant 0 : i32
    %c0_i32_0 = arith.constant 0 : i32
    %c0_i32_1 = arith.constant 0 : i32
    return %c0_i32, %c0_i32_0 : i32, i32
  }
  func.func @transform_7(%arg0: i32) -> (i32, i32) {
    %c0_i32 = arith.constant 0 : i32
    %c0_i32_0 = arith.constant 0 : i32
    %c0_i32_1 = arith.constant 0 : i32
    return %c0_i32, %c0_i32_0 : i32, i32
  }
  func.func @transform_8(%arg0: i32) -> (i32, i32) {
    %c0_i32 = arith.constant 0 : i32
    %c0_i32_0 = arith.constant 0 : i32
    %c0_i32_1 = arith.constant 0 : i32
    return %c0_i32, %c0_i32_0 : i32, i32
  }
  func.func @transform_9(%arg0: i32) -> (i32, i32) {
    %c0_i32 = arith.constant 0 : i32
    %c0_i32_0 = arith.constant 0 : i32
    %c0_i32_1 = arith.constant 0 : i32
    return %c0_i32, %c0_i32_0 : i32, i32
  }
  func.func @transform_10(%arg0: i32) -> (i32, i32) {
    %c0_i32 = arith.constant 0 : i32
    %c0_i32_0 = arith.constant 0 : i32
    %c0_i32_1 = arith.constant 0 : i32
    return %c0_i32, %c0_i32_0 : i32, i32
  }
  func.func @transform_11(%arg0: i32) -> (i32, i32) {
    %c0_i32 = arith.constant 0 : i32
    %c0_i32_0 = arith.constant 0 : i32
    %c0_i32_1 = arith.constant 0 : i32
    return %c0_i32, %c0_i32_0 : i32, i32
  }
}

</mosaic_0001>

<llo_original>
// kernel: _lambda_.1
$region0: #{_lambda_.1}
  #allocation0 [shape = 'u32[]', space=smem, size = 0x4, offset = 0x4, fixed_abs, tag = 'smem constant byte address 0x4 - core index']
  #allocation1 [shape = 'u32[144,128]{1,0:T(1,128)}', space=vmem, size = 0x12000, scoped, tag = 'internal scratch']
  #allocation2 [shape = 'f32[8,256]{1,0:T(8,128)}', space=vmem, size = 0x2000, scoped, tag = 'scratch operand']
  %s0 = inlined_call_operand.vmem [shape: bf16[64,16], index: 0, kind: input, shape index: {}]
  %s1 = inlined_call_operand.vmem [shape: bf16[16,32], index: 1, kind: input, shape index: {}]
  %s2 = inlined_call_operand.vmem [shape: f32[8,32], index: 2, kind: input, shape index: {}]
  %s3 = inlined_call_operand.vmem [shape: bf16[32,4], index: 3, kind: input, shape index: {}]
  %s4 = inlined_call_operand.vmem [shape: bf16[32,256], index: 4, kind: input, shape index: {}]
  %s5 = inlined_call_operand.vmem [shape: f32[1,256], index: 5, kind: input, shape index: {}]
  %s6 = inlined_call_operand.vmem [shape: bf16[256,32], index: 6, kind: input, shape index: {}]
  %s7 = inlined_call_operand.vmem [shape: f32[4,32], index: 7, kind: input, shape index: {}]
  %s8 = inlined_call_operand.vmem [shape: bf16[256,16], index: 8, kind: input, shape index: {}]
  %s9 = inlined_call_operand.vmem [shape: f32[1,16], index: 9, kind: input, shape index: {}]
  %s10 = inlined_call_operand.vmem [shape: f32[8,16], index: 10, kind: output, shape index: {0}]
  %s11 = inlined_call_operand.hbm [shape: f32[1,1], index: 11, kind: output, shape index: {1}]
  %12 = xla_tuple %s10, %s11
  %s13 = sld [smem:[#allocation0]]
  $region58: #{_lambda_.1} parent=0
    _
  %s15 = ssub.s32 1, %s13
  %s16 = scalar_select 0, %s15, %s13
  $region1: #{_lambda_.1} parent=0
    #allocation3 [shape = 'u8[512]{0}', space=vmem, size = 0x400, scoped, tag = 'output window, operand 1, single buffered']
    #allocation4 [shape = 's32[1]{0}', space=sflag, size = 0x4, scoped, tag = 'scoped memory for _lambda_.1']
    %17 = vsyncpa [#allocation4], 0
    // Predicated region
    $region2: #{_lambda_.1} parent=1 // pred_check
      _
    $region3: #{_lambda_.1} parent=1 // pred_check_branch
      %19 = sbr.rel (0) target = $region5
    $region4: #{_lambda_.1} parent=1 // pred_region
      _
    $region5: #{_lambda_.1} parent=1 // pred_fallthru
      _
    // Predicated region
    $region6: #{_lambda_.1} parent=1 // pred_check
      _
    $region7: #{_lambda_.1} parent=1 // pred_check_branch
      %21 = sbr.rel (0) target = $region9
    $region8: #{_lambda_.1} parent=1 // pred_region
      _
    $region9: #{_lambda_.1} parent=1 // pred_fallthru
      _
    // Predicated region
    $region10: #{_lambda_.1} parent=1 // pred_check
      _
    $region11: #{_lambda_.1} parent=1 // pred_check_branch
      %23 = sbr.rel (0) target = $region13
    $region12: #{_lambda_.1} parent=1 // pred_region
      _
    $region13: #{_lambda_.1} parent=1 // pred_fallthru
      _
    // Predicated region
    $region14: #{_lambda_.1} parent=1 // pred_check
      _
    $region15: #{_lambda_.1} parent=1 // pred_check_branch
      %25 = sbr.rel (0) target = $region17
    $region16: #{_lambda_.1} parent=1 // pred_region
      _
    $region17: #{_lambda_.1} parent=1 // pred_fallthru
      _
    // Predicated region
    $region18: #{_lambda_.1} parent=1 // pred_check
      _
    $region19: #{_lambda_.1} parent=1 // pred_check_branch
      %27 = sbr.rel (0) target = $region21
    $region20: #{_lambda_.1} parent=1 // pred_region
      _
    $region21: #{_lambda_.1} parent=1 // pred_fallthru
      _
    // Predicated region
    $region22: #{_lambda_.1} parent=1 // pred_check
      _
    $region23: #{_lambda_.1} parent=1 // pred_check_branch
      %29 = sbr.rel (0) target = $region25
    $region24: #{_lambda_.1} parent=1 // pred_region
      _
    $region25: #{_lambda_.1} parent=1 // pred_fallthru
      _
    // Predicated region
    $region26: #{_lambda_.1} parent=1 // pred_check
      _
    $region27: #{_lambda_.1} parent=1 // pred_check_branch
      %31 = sbr.rel (0) target = $region29
    $region28: #{_lambda_.1} parent=1 // pred_region
      _
    $region29: #{_lambda_.1} parent=1 // pred_fallthru
      _
    // Predicated region
    $region30: #{_lambda_.1} parent=1 // pred_check
      _
    $region31: #{_lambda_.1} parent=1 // pred_check_branch
      %33 = sbr.rel (0) target = $region33
    $region32: #{_lambda_.1} parent=1 // pred_region
      _
    $region33: #{_lambda_.1} parent=1 // pred_fallthru
      _
    // Predicated region
    $region34: #{_lambda_.1} parent=1 // pred_check
      _
    $region35: #{_lambda_.1} parent=1 // pred_check_branch
      %35 = sbr.rel (0) target = $region37
    $region36: #{_lambda_.1} parent=1 // pred_region
      _
    $region37: #{_lambda_.1} parent=1 // pred_fallthru
      _
    // Predicated region
    $region38: #{_lambda_.1} parent=1 // pred_check
      _
    $region39: #{_lambda_.1} parent=1 // pred_check_branch
      %37 = sbr.rel (0) target = $region41
    $region40: #{_lambda_.1} parent=1 // pred_region
      _
    $region41: #{_lambda_.1} parent=1 // pred_fallthru
      _
    %v39 = vld [vmem:[%s0] sm:$0xf]
    %v40 = vld [vmem:[%s0 + $0x4] sm:$0xf]
    %v41 = vld [vmem:[%s0 + $0x8] sm:$0xf]
    %v42 = vld [vmem:[%s0 + $0xc] sm:$0xf]
    %v43 = vld [vmem:[%s0 + $0x10] sm:$0xf]
    %v44 = vld [vmem:[%s0 + $0x14] sm:$0xf]
    %v45 = vld [vmem:[%s0 + $0x18] sm:$0xf]
    %v46 = vld [vmem:[%s0 + $0x1c] sm:$0xf]
    %v47 = vld [vmem:[%s1] sm:$0xf]
    %v48 = vld [vmem:[%s1 + $0x4] sm:$0xf]
    %v49 = vld [vmem:[%s2] sm:$0x1]
    %v50 = vlaneseq
    %v51 = vshrl.u32 %v50, 7
    %v52 = vsub.s32 0, %v51
    %v53 = vrot.slane %v49, %v52
    %v54 = vld [vmem:[%s2 + $0x1] sm:$0x1]
    %v55 = vlaneseq
    %v56 = vshrl.u32 %v55, 7
    %v57 = vsub.s32 0, %v56
    %v58 = vrot.slane %v54, %v57
    %v59 = vld [vmem:[%s2 + $0x2] sm:$0x1]
    %v60 = vlaneseq
    %v61 = vshrl.u32 %v60, 7
    %v62 = vsub.s32 0, %v61
    %v63 = vrot.slane %v59, %v62
    %v64 = vld [vmem:[%s2 + $0x3] sm:$0x1]
    %v65 = vlaneseq
    %v66 = vshrl.u32 %v65, 7
    %v67 = vsub.s32 0, %v66
    %v68 = vrot.slane %v64, %v67
    %v69 = vld [vmem:[%s2 + $0x4] sm:$0x1]
    %v70 = vlaneseq
    %v71 = vshrl.u32 %v70, 7
    %v72 = vsub.s32 0, %v71
    %v73 = vrot.slane %v69, %v72
    %v74 = vld [vmem:[%s2 + $0x5] sm:$0x1]
    %v75 = vlaneseq
    %v76 = vshrl.u32 %v75, 7
    %v77 = vsub.s32 0, %v76
    %v78 = vrot.slane %v74, %v77
    %v79 = vld [vmem:[%s2 + $0x6] sm:$0x1]
    %v80 = vlaneseq
    %v81 = vshrl.u32 %v80, 7
    %v82 = vsub.s32 0, %v81
    %v83 = vrot.slane %v79, %v82
    %v84 = vld [vmem:[%s2 + $0x7] sm:$0x1]
    %v85 = vlaneseq
    %v86 = vshrl.u32 %v85, 7
    %v87 = vsub.s32 0, %v86
    %v88 = vrot.slane %v84, %v87
    %v97 = vunpack.c.l.b16 %v39
    %v98 = vunpack.c.l.b16 %v40
    %v99 = vunpack.c.l.b16 %v41
    %v100 = vunpack.c.l.b16 %v42
    %v101 = vunpack.c.l.b16 %v43
    %v102 = vunpack.c.l.b16 %v44
    %v103 = vunpack.c.l.b16 %v45
    %v104 = vunpack.c.l.b16 %v46
    %v105 = vpack.c.b16 %v98, %v97
    %v106 = vpack.c.b16 %v100, %v99
    %v107 = vpack.c.b16 %v102, %v101
    %v108 = vpack.c.b16 %v104, %v103
    %v111 = vunpack.c.l.b16 %v47
    %v112 = vunpack.c.l.b16 %v48
    %v113 = vpack.c.b16 %v112, %v111
    %vm115 = vcmask 130048
    %v117 = vsel %vm115, %v105, 0
    %v120 = vsel %vm115, %v106, 0
    %v123 = vsel %vm115, %v107, 0
    %v126 = vsel %vm115, %v108, 0
    %128 = vmatprep.subr.bf16.mxu0 0
    %129 = vmatpush1.bf16.msra.mxu0 %v113
    %130 = vmatprep.subr.bf16.mxu0 0
    %131 = vmatpush1.bf16.msra.mxu0 0
    %132 = vmatprep.subr.bf16.mxu0 0
    %133 = vmatpush1.bf16.msra.mxu0 0
    %134 = vmatprep.subr.bf16.mxu0 0
    %135 = vmatpush1.bf16.msra.mxu0 0
    %136 = vmatprep.subr.bf16.mxu0 0
    %137 = vmatpush1.bf16.msra.mxu0 0
    %138 = vmatprep.subr.bf16.mxu0 0
    %139 = vmatpush1.bf16.msra.mxu0 0
    %140 = vmatprep.subr.bf16.mxu0 0
    %141 = vmatpush1.bf16.msra.mxu0 0
    %142 = vmatprep.subr.bf16.mxu0 0
    %143 = vmatpush1.bf16.msra.mxu0 0
    %144 = vmatprep.subr.bf16.mxu0 0
    %145 = vmatpush1.bf16.msra.mxu0 0
    %146 = vmatprep.subr.bf16.mxu0 0
    %147 = vmatpush1.bf16.msra.mxu0 0
    %148 = vmatprep.subr.bf16.mxu0 0
    %149 = vmatpush1.bf16.msra.mxu0 0
    %150 = vmatprep.subr.bf16.mxu0 0
    %151 = vmatpush1.bf16.msra.mxu0 0
    %152 = vmatprep.subr.bf16.mxu0 0
    %153 = vmatpush1.bf16.msra.mxu0 0
    %154 = vmatprep.subr.bf16.mxu0 0
    %155 = vmatpush1.bf16.msra.mxu0 0
    %156 = vmatprep.subr.bf16.mxu0 0
    %157 = vmatpush1.bf16.msra.mxu0 0
    %158 = vmatprep.subr.bf16.mxu0 0
    %159 = vmatpush1.bf16.msra.mxu0 0
    %160 = vmatprep.mubr.bf16.mxu0 0
    %161 = vmatmul.mubr.bf16.gmra.mrb[0].mxu0 %v117
    %v162 = vpop.f32.mrb[0].mxu0
    %v163 = vadd.f32 %v53, %v162
    %v164 = vpop.f32.mrb[0].mxu0
    %v165 = vpop.f32.mrb[0].mxu0
    %v166 = vadd.f32 %v58, %v165
    %v167 = vpop.f32.mrb[0].mxu0
    %168 = vmatprep.mubr.bf16.mxu0 0
    %169 = vmatmul.mubr.bf16.gmra.mrb[0].mxu0 %v120
    %v170 = vpop.f32.mrb[0].mxu0
    %v171 = vadd.f32 %v63, %v170
    %v172 = vpop.f32.mrb[0].mxu0
    %v173 = vpop.f32.mrb[0].mxu0
    %v174 = vadd.f32 %v68, %v173
    %v175 = vpop.f32.mrb[0].mxu0
    %176 = vmatprep.mubr.bf16.mxu0 0
    %177 = vmatmul.mubr.bf16.gmra.mrb[0].mxu0 %v123
    %v178 = vpop.f32.mrb[0].mxu0
    %v179 = vadd.f32 %v73, %v178
    %v180 = vpop.f32.mrb[0].mxu0
    %v181 = vpop.f32.mrb[0].mxu0
    %v182 = vadd.f32 %v78, %v181
    %v183 = vpop.f32.mrb[0].mxu0
    %184 = vmatprep.mubr.bf16.mxu0 0
    %185 = vmatmul.mubr.bf16.gmra.mrb[0].mxu0 %v126
    %v186 = vpop.f32.mrb[0].mxu0
    %v187 = vadd.f32 %v83, %v186
    %v188 = vpop.f32.mrb[0].mxu0
    %v189 = vpop.f32.mrb[0].mxu0
    %v190 = vadd.f32 %v88, %v189
    %v191 = vpop.f32.mrb[0].mxu0
    %192 = vdwg.mxu0
    %v193 = vpack.c.bf16 %v166, %v163
    %v194 = vpack.c.bf16 %v174, %v171
    %v195 = vpack.c.bf16 %v182, %v179
    %v196 = vpack.c.bf16 %v190, %v187
    %v197 = vld [vmem:[%s3] sm:$0xf]
    %v198 = vld [vmem:[%s3 + $0x4] sm:$0xf]
    %v199 = vld [vmem:[%s3 + $0x8] sm:$0xf]
    %v200 = vld [vmem:[%s3 + $0xc] sm:$0xf]
    %v205 = vunpack.c.l.b16 %v197
    %v206 = vunpack.c.l.b16 %v198
    %v207 = vunpack.c.l.b16 %v199
    %v208 = vunpack.c.l.b16 %v200
    %v209 = vpack.c.b16 %v206, %v205
    %v210 = vpack.c.b16 %v208, %v207
    %vm213 = vcmask 261120
    %v215 = vsel %vm213, %v193, 0
    %v218 = vsel %vm213, %v194, 0
    %v221 = vsel %vm213, %v195, 0
    %v224 = vsel %vm213, %v196, 0
    %226 = vmatprep.subr.bf16.mxu0 0
    %227 = vmatpush1.bf16.msra.mxu0 %v209
    %228 = vmatprep.subr.bf16.mxu0 0
    %229 = vmatpush1.bf16.msra.mxu0 %v210
    %230 = vmatprep.subr.bf16.mxu0 0
    %231 = vmatpush1.bf16.msra.mxu0 0
    %232 = vmatprep.subr.bf16.mxu0 0
    %233 = vmatpush1.bf16.msra.mxu0 0
    %234 = vmatprep.subr.bf16.mxu0 0
    %235 = vmatpush1.bf16.msra.mxu0 0
    %236 = vmatprep.subr.bf16.mxu0 0
    %237 = vmatpush1.bf16.msra.mxu0 0
    %238 = vmatprep.subr.bf16.mxu0 0
    %239 = vmatpush1.bf16.msra.mxu0 0
    %240 = vmatprep.subr.bf16.mxu0 0
    %241 = vmatpush1.bf16.msra.mxu0 0
    %242 = vmatprep.subr.bf16.mxu0 0
    %243 = vmatpush1.bf16.msra.mxu0 0
    %244 = vmatprep.subr.bf16.mxu0 0
    %245 = vmatpush1.bf16.msra.mxu0 0
    %246 = vmatprep.subr.bf16.mxu0 0
    %247 = vmatpush1.bf16.msra.mxu0 0
    %248 = vmatprep.subr.bf16.mxu0 0
    %249 = vmatpush1.bf16.msra.mxu0 0
    %250 = vmatprep.subr.bf16.mxu0 0
    %251 = vmatpush1.bf16.msra.mxu0 0
    %252 = vmatprep.subr.bf16.mxu0 0
    %253 = vmatpush1.bf16.msra.mxu0 0
    %254 = vmatprep.subr.bf16.mxu0 0
    %255 = vmatpush1.bf16.msra.mxu0 0
    %256 = vmatprep.subr.bf16.mxu0 0
    %257 = vmatpush1.bf16.msra.mxu0 0
    %258 = vmatprep.mubr.bf16.mxu0 0
    %259 = vmatmul.mubr.bf16.gmra.mrb[0].mxu0 %v215
    %v260 = vpop.f32.mrb[0].mxu0
    %v261 = vadd.f32 0.0, %v260
    %v262 = vpop.f32.mrb[0].mxu0
    %v263 = vpop.f32.mrb[0].mxu0
    %v264 = vadd.f32 0.0, %v263
    %v265 = vpop.f32.mrb[0].mxu0
    %266 = vmatprep.mubr.bf16.mxu0 0
    %267 = vmatmul.mubr.bf16.gmra.mrb[0].mxu0 %v218
    %v268 = vpop.f32.mrb[0].mxu0
    %v269 = vadd.f32 0.0, %v268
    %v270 = vpop.f32.mrb[0].mxu0
    %v271 = vpop.f32.mrb[0].mxu0
    %v272 = vadd.f32 0.0, %v271
    %v273 = vpop.f32.mrb[0].mxu0
    %274 = vmatprep.mubr.bf16.mxu0 0
    %275 = vmatmul.mubr.bf16.gmra.mrb[0].mxu0 %v221
    %v276 = vpop.f32.mrb[0].mxu0
    %v277 = vadd.f32 0.0, %v276
    %v278 = vpop.f32.mrb[0].mxu0
    %v279 = vpop.f32.mrb[0].mxu0
    %v280 = vadd.f32 0.0, %v279
    %v281 = vpop.f32.mrb[0].mxu0
    %282 = vmatprep.mubr.bf16.mxu0 0
    %283 = vmatmul.mubr.bf16.gmra.mrb[0].mxu0 %v224
    %v284 = vpop.f32.mrb[0].mxu0
    %v285 = vadd.f32 0.0, %v284
    %v286 = vpop.f32.mrb[0].mxu0
    %v287 = vpop.f32.mrb[0].mxu0
    %v288 = vadd.f32 0.0, %v287
    %v289 = vpop.f32.mrb[0].mxu0
    %290 = vdwg.mxu0
    %vm291 = vcmask 31744
    %v292 = vsel %vm291, %v261, -inf
    %293 = vmax.xlane.f32.xlu0 %v292
    %v294 = vpop.xlane.xlu0 %293
    %v295 = vsel %vm291, %v264, -inf
    %296 = vmax.xlane.f32.xlu0 %v295
    %v297 = vpop.xlane.xlu0 %296
    %v298 = vsel %vm291, %v269, -inf
    %299 = vmax.xlane.f32.xlu0 %v298
    %v300 = vpop.xlane.xlu0 %299
    %v301 = vsel %vm291, %v272, -inf
    %302 = vmax.xlane.f32.xlu0 %v301
    %v303 = vpop.xlane.xlu0 %302
    %v304 = vsel %vm291, %v277, -inf
    %305 = vmax.xlane.f32.xlu0 %v304
    %v306 = vpop.xlane.xlu0 %305
    %v307 = vsel %vm291, %v280, -inf
    %308 = vmax.xlane.f32.xlu0 %v307
    %v309 = vpop.xlane.xlu0 %308
    %v310 = vsel %vm291, %v285, -inf
    %311 = vmax.xlane.f32.xlu0 %v310
    %v312 = vpop.xlane.xlu0 %311
    %v313 = vsel %vm291, %v288, -inf
    %314 = vmax.xlane.f32.xlu0 %v313
    %v315 = vpop.xlane.xlu0 %314
    %v316 = vsub.f32 %v261, %v294
    %v317 = vsub.f32 %v264, %v297
    %v318 = vsub.f32 %v269, %v300
    %v319 = vsub.f32 %v272, %v303
    %v320 = vsub.f32 %v277, %v306
    %v321 = vsub.f32 %v280, %v309
    %v322 = vsub.f32 %v285, %v312
    %v323 = vsub.f32 %v288, %v315
    %v324 = vmul.f32 %v316, 1.442695
    %v325 = vpow.pop %v324
    %v326 = vmul.f32 %v317, 1.442695
    %v327 = vpow.pop %v326
    %v328 = vmul.f32 %v318, 1.442695
    %v329 = vpow.pop %v328
    %v330 = vmul.f32 %v319, 1.442695
    %v331 = vpow.pop %v330
    %v332 = vmul.f32 %v320, 1.442695
    %v333 = vpow.pop %v332
    %v334 = vmul.f32 %v321, 1.442695
    %v335 = vpow.pop %v334
    %v336 = vmul.f32 %v322, 1.442695
    %v337 = vpow.pop %v336
    %v338 = vmul.f32 %v323, 1.442695
    %v339 = vpow.pop %v338
    %v340 = vsel %vm291, %v325, 0.0
    %341 = vadd.xlane.f32.xlu0 %v340
    %v342 = vpop.xlane.xlu0 %341
    %v343 = vsel %vm291, %v327, 0.0
    %344 = vadd.xlane.f32.xlu0 %v343
    %v345 = vpop.xlane.xlu0 %344
    %v346 = vsel %vm291, %v329, 0.0
    %347 = vadd.xlane.f32.xlu0 %v346
    %v348 = vpop.xlane.xlu0 %347
    %v349 = vsel %vm291, %v331, 0.0
    %350 = vadd.xlane.f32.xlu0 %v349
    %v351 = vpop.xlane.xlu0 %350
    %v352 = vsel %vm291, %v333, 0.0
    %353 = vadd.xlane.f32.xlu0 %v352
    %v354 = vpop.xlane.xlu0 %353
    %v355 = vsel %vm291, %v335, 0.0
    %356 = vadd.xlane.f32.xlu0 %v355
    %v357 = vpop.xlane.xlu0 %356
    %v358 = vsel %vm291, %v337, 0.0
    %359 = vadd.xlane.f32.xlu0 %v358
    %v360 = vpop.xlane.xlu0 %359
    %v361 = vsel %vm291, %v339, 0.0
    %362 = vadd.xlane.f32.xlu0 %v361
    %v363 = vpop.xlane.xlu0 %362
    %v364 = vrcp.pop %v342
    %v365 = vrcp.pop %v345
    %v366 = vrcp.pop %v348
    %v367 = vrcp.pop %v351
    %v368 = vrcp.pop %v354
    %v369 = vrcp.pop %v357
    %v370 = vrcp.pop %v360
    %v371 = vrcp.pop %v363
    %v372 = vmul.f32 %v325, %v364
    %v373 = vmul.f32 %v327, %v365
    %v374 = vmul.f32 %v329, %v366
    %v375 = vmul.f32 %v331, %v367
    %v376 = vmul.f32 %v333, %v368
    %v377 = vmul.f32 %v335, %v369
    %v378 = vmul.f32 %v337, %v370
    %v379 = vmul.f32 %v339, %v371
    %v380 = vlaneseq
    %v381 = vand.u32 %v380, 127
    %v382 = vcvt.s32.f32 %v381
    %v383 = vsel %vm291, %v325, -inf
    %384 = vmax.xlane.f32.xlu0 %v383
    %v385 = vpop.xlane.xlu0 %384
    %v386 = vsel %vm291, %v327, -inf
    %387 = vmax.xlane.f32.xlu0 %v386
    %v388 = vpop.xlane.xlu0 %387
    %v389 = vsel %vm291, %v329, -inf
    %390 = vmax.xlane.f32.xlu0 %v389
    %v391 = vpop.xlane.xlu0 %390
    %v392 = vsel %vm291, %v331, -inf
    %393 = vmax.xlane.f32.xlu0 %v392
    %v394 = vpop.xlane.xlu0 %393
    %v395 = vsel %vm291, %v333, -inf
    %396 = vmax.xlane.f32.xlu0 %v395
    %v397 = vpop.xlane.xlu0 %396
    %v398 = vsel %vm291, %v335, -inf
    %399 = vmax.xlane.f32.xlu0 %v398
    %v400 = vpop.xlane.xlu0 %399
    %v401 = vsel %vm291, %v337, -inf
    %402 = vmax.xlane.f32.xlu0 %v401
    %v403 = vpop.xlane.xlu0 %402
    %v404 = vsel %vm291, %v339, -inf
    %405 = vmax.xlane.f32.xlu0 %v404
    %v406 = vpop.xlane.xlu0 %405
    %vm407 = vcmp.ge.f32.partialorder %v325, %v385
    %vm408 = vcmp.ge.f32.partialorder %v327, %v388
    %vm409 = vcmp.ge.f32.partialorder %v329, %v391
    %vm410 = vcmp.ge.f32.partialorder %v331, %v394
    %vm411 = vcmp.ge.f32.partialorder %v333, %v397
    %vm412 = vcmp.ge.f32.partialorder %v335, %v400
    %vm413 = vcmp.ge.f32.partialorder %v337, %v403
    %vm414 = vcmp.ge.f32.partialorder %v339, %v406
    %v415 = vsel %vm407, %v382, 4.0
    %v416 = vsel %vm408, %v382, 4.0
    %v417 = vsel %vm409, %v382, 4.0
    %v418 = vsel %vm410, %v382, 4.0
    %v419 = vsel %vm411, %v382, 4.0
    %v420 = vsel %vm412, %v382, 4.0
    %v421 = vsel %vm413, %v382, 4.0
    %v422 = vsel %vm414, %v382, 4.0
    %v423 = vsel %vm291, %v415, inf
    %424 = vmin.xlane.f32.xlu0 %v423
    %v425 = vpop.xlane.xlu0 %424
    %v426 = vsel %vm291, %v416, inf
    %427 = vmin.xlane.f32.xlu0 %v426
    %v428 = vpop.xlane.xlu0 %427
    %v429 = vsel %vm291, %v417, inf
    %430 = vmin.xlane.f32.xlu0 %v429
    %v431 = vpop.xlane.xlu0 %430
    %v432 = vsel %vm291, %v418, inf
    %433 = vmin.xlane.f32.xlu0 %v432
    %v434 = vpop.xlane.xlu0 %433
    %v435 = vsel %vm291, %v419, inf
    %436 = vmin.xlane.f32.xlu0 %v435
    %v437 = vpop.xlane.xlu0 %436
    %v438 = vsel %vm291, %v420, inf
    %439 = vmin.xlane.f32.xlu0 %v438
    %v440 = vpop.xlane.xlu0 %439
    %v441 = vsel %vm291, %v421, inf
    %442 = vmin.xlane.f32.xlu0 %v441
    %v443 = vpop.xlane.xlu0 %442
    %v444 = vsel %vm291, %v422, inf
    %445 = vmin.xlane.f32.xlu0 %v444
    %v446 = vpop.xlane.xlu0 %445
    %vm447 = vcmp.eq.f32.partialorder %v382, %v425
    %vm448 = vcmp.eq.f32.partialorder %v382, %v428
    %vm449 = vcmp.eq.f32.partialorder %v382, %v431
    %vm450 = vcmp.eq.f32.partialorder %v382, %v434
    %vm451 = vcmp.eq.f32.partialorder %v382, %v437
    %vm452 = vcmp.eq.f32.partialorder %v382, %v440
    %vm453 = vcmp.eq.f32.partialorder %v382, %v443
    %vm454 = vcmp.eq.f32.partialorder %v382, %v446
    %v455 = vsel %vm447, %v325, 0.0
    %v456 = vsel %vm448, %v327, 0.0
    %v457 = vsel %vm449, %v329, 0.0
    %v458 = vsel %vm450, %v331, 0.0
    %v459 = vsel %vm451, %v333, 0.0
    %v460 = vsel %vm452, %v335, 0.0
    %v461 = vsel %vm453, %v337, 0.0
    %v462 = vsel %vm454, %v339, 0.0
    %v463 = vsel %vm447, -1e+30, %v325
    %v464 = vsel %vm448, -1e+30, %v327
    %v465 = vsel %vm449, -1e+30, %v329
    %v466 = vsel %vm450, -1e+30, %v331
    %v467 = vsel %vm451, -1e+30, %v333
    %v468 = vsel %vm452, -1e+30, %v335
    %v469 = vsel %vm453, -1e+30, %v337
    %v470 = vsel %vm454, -1e+30, %v339
    %v471 = vsel %vm291, %v463, -inf
    %472 = vmax.xlane.f32.xlu0 %v471
    %v473 = vpop.xlane.xlu0 %472
    %v474 = vsel %vm291, %v464, -inf
    %475 = vmax.xlane.f32.xlu0 %v474
    %v476 = vpop.xlane.xlu0 %475
    %v477 = vsel %vm291, %v465, -inf
    %478 = vmax.xlane.f32.xlu0 %v477
    %v479 = vpop.xlane.xlu0 %478
    %v480 = vsel %vm291, %v466, -inf
    %481 = vmax.xlane.f32.xlu0 %v480
    %v482 = vpop.xlane.xlu0 %481
    %v483 = vsel %vm291, %v467, -inf
    %484 = vmax.xlane.f32.xlu0 %v483
    %v485 = vpop.xlane.xlu0 %484
    %v486 = vsel %vm291, %v468, -inf
    %487 = vmax.xlane.f32.xlu0 %v486
    %v488 = vpop.xlane.xlu0 %487
    %v489 = vsel %vm291, %v469, -inf
    %490 = vmax.xlane.f32.xlu0 %v489
    %v491 = vpop.xlane.xlu0 %490
    %v492 = vsel %vm291, %v470, -inf
    %493 = vmax.xlane.f32.xlu0 %v492
    %v494 = vpop.xlane.xlu0 %493
    %vm495 = vcmp.ge.f32.partialorder %v463, %v473
    %vm496 = vcmp.ge.f32.partialorder %v464, %v476
    %vm497 = vcmp.ge.f32.partialorder %v465, %v479
    %vm498 = vcmp.ge.f32.partialorder %v466, %v482
    %vm499 = vcmp.ge.f32.partialorder %v467, %v485
    %vm500 = vcmp.ge.f32.partialorder %v468, %v488
    %vm501 = vcmp.ge.f32.partialorder %v469, %v491
    %vm502 = vcmp.ge.f32.partialorder %v470, %v494
    %v503 = vsel %vm495, %v382, 4.0
    %v504 = vsel %vm496, %v382, 4.0
    %v505 = vsel %vm497, %v382, 4.0
    %v506 = vsel %vm498, %v382, 4.0
    %v507 = vsel %vm499, %v382, 4.0
    %v508 = vsel %vm500, %v382, 4.0
    %v509 = vsel %vm501, %v382, 4.0
    %v510 = vsel %vm502, %v382, 4.0
    %v511 = vsel %vm291, %v503, inf
    %512 = vmin.xlane.f32.xlu0 %v511
    %v513 = vpop.xlane.xlu0 %512
    %v514 = vsel %vm291, %v504, inf
    %515 = vmin.xlane.f32.xlu0 %v514
    %v516 = vpop.xlane.xlu0 %515
    %v517 = vsel %vm291, %v505, inf
    %518 = vmin.xlane.f32.xlu0 %v517
    %v519 = vpop.xlane.xlu0 %518
    %v520 = vsel %vm291, %v506, inf
    %521 = vmin.xlane.f32.xlu0 %v520
    %v522 = vpop.xlane.xlu0 %521
    %v523 = vsel %vm291, %v507, inf
    %524 = vmin.xlane.f32.xlu0 %v523
    %v525 = vpop.xlane.xlu0 %524
    %v526 = vsel %vm291, %v508, inf
    %527 = vmin.xlane.f32.xlu0 %v526
    %v528 = vpop.xlane.xlu0 %527
    %v529 = vsel %vm291, %v509, inf
    %530 = vmin.xlane.f32.xlu0 %v529
    %v531 = vpop.xlane.xlu0 %530
    %v532 = vsel %vm291, %v510, inf
    %533 = vmin.xlane.f32.xlu0 %v532
    %v534 = vpop.xlane.xlu0 %533
    %vm535 = vcmp.eq.f32.partialorder %v382, %v513
    %vm536 = vcmp.eq.f32.partialorder %v382, %v516
    %vm537 = vcmp.eq.f32.partialorder %v382, %v519
    %vm538 = vcmp.eq.f32.partialorder %v382, %v522
    %vm539 = vcmp.eq.f32.partialorder %v382, %v525
    %vm540 = vcmp.eq.f32.partialorder %v382, %v528
    %vm541 = vcmp.eq.f32.partialorder %v382, %v531
    %vm542 = vcmp.eq.f32.partialorder %v382, %v534
    %v543 = vsel %vm535, %v325, %v455
    %v544 = vsel %vm536, %v327, %v456
    %v545 = vsel %vm537, %v329, %v457
    %v546 = vsel %vm538, %v331, %v458
    %v547 = vsel %vm539, %v333, %v459
    %v548 = vsel %vm540, %v335, %v460
    %v549 = vsel %vm541, %v337, %v461
    %v550 = vsel %vm542, %v339, %v462
    %v551 = vsel %vm291, %v543, 0.0
    %552 = vadd.xlane.f32.xlu0 %v551
    %v553 = vpop.xlane.xlu0 %552
    %v554 = vsel %vm291, %v544, 0.0
    %555 = vadd.xlane.f32.xlu0 %v554
    %v556 = vpop.xlane.xlu0 %555
    %v557 = vsel %vm291, %v545, 0.0
    %558 = vadd.xlane.f32.xlu0 %v557
    %v559 = vpop.xlane.xlu0 %558
    %v560 = vsel %vm291, %v546, 0.0
    %561 = vadd.xlane.f32.xlu0 %v560
    %v562 = vpop.xlane.xlu0 %561
    %v563 = vsel %vm291, %v547, 0.0
    %564 = vadd.xlane.f32.xlu0 %v563
    %v565 = vpop.xlane.xlu0 %564
    %v566 = vsel %vm291, %v548, 0.0
    %567 = vadd.xlane.f32.xlu0 %v566
    %v568 = vpop.xlane.xlu0 %567
    %v569 = vsel %vm291, %v549, 0.0
    %570 = vadd.xlane.f32.xlu0 %v569
    %v571 = vpop.xlane.xlu0 %570
    %v572 = vsel %vm291, %v550, 0.0
    %573 = vadd.xlane.f32.xlu0 %v572
    %v574 = vpop.xlane.xlu0 %573
    %v575 = vrcp.pop %v553
    %v576 = vmul.f32 %v543, %v575
    %v577 = vrcp.pop %v556
    %v578 = vmul.f32 %v544, %v577
    %v579 = vrcp.pop %v559
    %v580 = vmul.f32 %v545, %v579
    %v581 = vrcp.pop %v562
    %v582 = vmul.f32 %v546, %v581
    %v583 = vrcp.pop %v565
    %v584 = vmul.f32 %v547, %v583
    %v585 = vrcp.pop %v568
    %v586 = vmul.f32 %v548, %v585
    %v587 = vrcp.pop %v571
    %v588 = vmul.f32 %v549, %v587
    %v589 = vrcp.pop %v574
    %v590 = vmul.f32 %v550, %v589
    %v591 = vld [vmem:[%s4] sm:$0xff]
    %v592 = vld [vmem:[%s4 + $0x8] sm:$0xff]
    %v593 = vld [vmem:[%s4 + $0x10] sm:$0xff]
    %v594 = vld [vmem:[%s4 + $0x18] sm:$0xff]
    %v595 = vld [vmem:[%s5] sm:$0x3]
    %v597 = vlaneseq
    %v598 = vshrl.u32 %v597, 7
    %v599 = vsub.s32 0, %v598
    %v600 = vrot.slane %v595, %v599
    %v601 = vlaneseq
    %v602 = vshrl.u32 %v601, 7
    %v603 = vsub.s32 1, %v602
    %v604 = vrot.slane %v595, %v603
    %v611 = vunpack.c.l.b16 %v591
    %v612 = vunpack.c.h.b16 %v591
    %v613 = vunpack.c.l.b16 %v592
    %v614 = vunpack.c.h.b16 %v592
    %v615 = vunpack.c.l.b16 %v593
    %v616 = vunpack.c.h.b16 %v593
    %v617 = vunpack.c.l.b16 %v594
    %v618 = vunpack.c.h.b16 %v594
    %v619 = vpack.c.b16 %v613, %v611
    %v620 = vpack.c.b16 %v614, %v612
    %v621 = vpack.c.b16 %v617, %v615
    %v622 = vpack.c.b16 %v618, %v616
    %627 = vmatprep.subr.bf16.mxu0 %v620
    %628 = vmatpush1.bf16.msra.mxu0 %v619
    %629 = vmatprep.subr.bf16.mxu0 %v622
    %630 = vmatpush1.bf16.msra.mxu0 %v621
    %631 = vmatprep.subr.bf16.mxu0 0
    %632 = vmatpush1.bf16.msra.mxu0 0
    %633 = vmatprep.subr.bf16.mxu0 0
    %634 = vmatpush1.bf16.msra.mxu0 0
    %635 = vmatprep.subr.bf16.mxu0 0
    %636 = vmatpush1.bf16.msra.mxu0 0
    %637 = vmatprep.subr.bf16.mxu0 0
    %638 = vmatpush1.bf16.msra.mxu0 0
    %639 = vmatprep.subr.bf16.mxu0 0
    %640 = vmatpush1.bf16.msra.mxu0 0
    %641 = vmatprep.subr.bf16.mxu0 0
    %642 = vmatpush1.bf16.msra.mxu0 0
    %643 = vmatprep.subr.bf16.mxu0 0
    %644 = vmatpush1.bf16.msra.mxu0 0
    %645 = vmatprep.subr.bf16.mxu0 0
    %646 = vmatpush1.bf16.msra.mxu0 0
    %647 = vmatprep.subr.bf16.mxu0 0
    %648 = vmatpush1.bf16.msra.mxu0 0
    %649 = vmatprep.subr.bf16.mxu0 0
    %650 = vmatpush1.bf16.msra.mxu0 0
    %651 = vmatprep.subr.bf16.mxu0 0
    %652 = vmatpush1.bf16.msra.mxu0 0
    %653 = vmatprep.subr.bf16.mxu0 0
    %654 = vmatpush1.bf16.msra.mxu0 0
    %655 = vmatprep.subr.bf16.mxu0 0
    %656 = vmatpush1.bf16.msra.mxu0 0
    %657 = vmatprep.subr.bf16.mxu0 0
    %658 = vmatpush1.bf16.msra.mxu0 0
    %659 = vmatprep.mubr.bf16.mxu0 0
    %660 = vmatmul.mubr.bf16.gmra.mrb[0].mxu0 %v215
    %v661 = vpop.f32.mrb[0].mxu0
    %v662 = vadd.f32 %v600, %v661
    %v663 = vpop.f32.mrb[0].mxu0
    %v664 = vadd.f32 %v604, %v663
    %v665 = vpop.f32.mrb[0].mxu0
    %v666 = vadd.f32 %v600, %v665
    %v667 = vpop.f32.mrb[0].mxu0
    %v668 = vadd.f32 %v604, %v667
    %669 = vmatprep.mubr.bf16.mxu0 0
    %670 = vmatmul.mubr.bf16.gmra.mrb[0].mxu0 %v218
    %v671 = vpop.f32.mrb[0].mxu0
    %v672 = vadd.f32 %v600, %v671
    %v673 = vpop.f32.mrb[0].mxu0
    %v674 = vadd.f32 %v604, %v673
    %v675 = vpop.f32.mrb[0].mxu0
    %v676 = vadd.f32 %v600, %v675
    %v677 = vpop.f32.mrb[0].mxu0
    %v678 = vadd.f32 %v604, %v677
    %679 = vmatprep.mubr.bf16.mxu0 0
    %680 = vmatmul.mubr.bf16.gmra.mrb[0].mxu0 %v221
    %v681 = vpop.f32.mrb[0].mxu0
    %v682 = vadd.f32 %v600, %v681
    %v683 = vpop.f32.mrb[0].mxu0
    %v684 = vadd.f32 %v604, %v683
    %v685 = vpop.f32.mrb[0].mxu0
    %v686 = vadd.f32 %v600, %v685
    %v687 = vpop.f32.mrb[0].mxu0
    %v688 = vadd.f32 %v604, %v687
    %689 = vmatprep.mubr.bf16.mxu0 0
    %690 = vmatmul.mubr.bf16.gmra.mrb[0].mxu0 %v224
    %v691 = vpop.f32.mrb[0].mxu0
    %v692 = vadd.f32 %v600, %v691
    %v693 = vpop.f32.mrb[0].mxu0
    %v694 = vadd.f32 %v604, %v693
    %v695 = vpop.f32.mrb[0].mxu0
    %v696 = vadd.f32 %v600, %v695
    %v697 = vpop.f32.mrb[0].mxu0
    %v698 = vadd.f32 %v604, %v697
    %699 = vdwg.mxu0
    %v700 = vmul.f32 %v662, %v662
    %v701 = vmul.f32 %v664, %v664
    %v702 = vmul.f32 %v666, %v666
    %v703 = vmul.f32 %v668, %v668
    %v704 = vmul.f32 %v672, %v672
    %v705 = vmul.f32 %v674, %v674
    %v706 = vmul.f32 %v676, %v676
    %v707 = vmul.f32 %v678, %v678
    %v708 = vmul.f32 %v682, %v682
    %v709 = vmul.f32 %v684, %v684
    %v710 = vmul.f32 %v686, %v686
    %v711 = vmul.f32 %v688, %v688
    %v712 = vmul.f32 %v692, %v692
    %v713 = vmul.f32 %v694, %v694
    %v714 = vmul.f32 %v696, %v696
    %v715 = vmul.f32 %v698, %v698
    %v716 = vmul.f32 %v662, %v700
    %v717 = vmul.f32 %v664, %v701
    %v718 = vmul.f32 %v666, %v702
    %v719 = vmul.f32 %v668, %v703
    %v720 = vmul.f32 %v672, %v704
    %v721 = vmul.f32 %v674, %v705
    %v722 = vmul.f32 %v676, %v706
    %v723 = vmul.f32 %v678, %v707
    %v724 = vmul.f32 %v682, %v708
    %v725 = vmul.f32 %v684, %v709
    %v726 = vmul.f32 %v686, %v710
    %v727 = vmul.f32 %v688, %v711
    %v728 = vmul.f32 %v692, %v712
    %v729 = vmul.f32 %v694, %v713
    %v730 = vmul.f32 %v696, %v714
    %v731 = vmul.f32 %v698, %v715
    %v732 = vmul.f32 %v716, 0.044715
    %v733 = vmul.f32 %v717, 0.044715
    %v734 = vmul.f32 %v718, 0.044715
    %v735 = vmul.f32 %v719, 0.044715
    %v736 = vmul.f32 %v720, 0.044715
    %v737 = vmul.f32 %v721, 0.044715
    %v738 = vmul.f32 %v722, 0.044715
    %v739 = vmul.f32 %v723, 0.044715
    %v740 = vmul.f32 %v724, 0.044715
    %v741 = vmul.f32 %v725, 0.044715
    %v742 = vmul.f32 %v726, 0.044715
    %v743 = vmul.f32 %v727, 0.044715
    %v744 = vmul.f32 %v728, 0.044715
    %v745 = vmul.f32 %v729, 0.044715
    %v746 = vmul.f32 %v730, 0.044715
    %v747 = vmul.f32 %v731, 0.044715
    %v748 = vadd.f32 %v662, %v732
    %v749 = vadd.f32 %v664, %v733
    %v750 = vadd.f32 %v666, %v734
    %v751 = vadd.f32 %v668, %v735
    %v752 = vadd.f32 %v672, %v736
    %v753 = vadd.f32 %v674, %v737
    %v754 = vadd.f32 %v676, %v738
    %v755 = vadd.f32 %v678, %v739
    %v756 = vadd.f32 %v682, %v740
    %v757 = vadd.f32 %v684, %v741
    %v758 = vadd.f32 %v686, %v742
    %v759 = vadd.f32 %v688, %v743
    %v760 = vadd.f32 %v692, %v744
    %v761 = vadd.f32 %v694, %v745
    %v762 = vadd.f32 %v696, %v746
    %v763 = vadd.f32 %v698, %v747
    %v764 = vmul.f32 %v748, 0.7978846
    %v765 = vmul.f32 %v749, 0.7978846
    %v766 = vmul.f32 %v750, 0.7978846
    %v767 = vmul.f32 %v751, 0.7978846
    %v768 = vmul.f32 %v752, 0.7978846
    %v769 = vmul.f32 %v753, 0.7978846
    %v770 = vmul.f32 %v754, 0.7978846
    %v771 = vmul.f32 %v755, 0.7978846
    %v772 = vmul.f32 %v756, 0.7978846
    %v773 = vmul.f32 %v757, 0.7978846
    %v774 = vmul.f32 %v758, 0.7978846
    %v775 = vmul.f32 %v759, 0.7978846
    %v776 = vmul.f32 %v760, 0.7978846
    %v777 = vmul.f32 %v761, 0.7978846
    %v778 = vmul.f32 %v762, 0.7978846
    %v779 = vmul.f32 %v763, 0.7978846
    %v780 = vtanh.pop %v764
    %v781 = vtanh.pop %v765
    %v782 = vtanh.pop %v766
    %v783 = vtanh.pop %v767
    %v784 = vtanh.pop %v768
    %v785 = vtanh.pop %v769
    %v786 = vtanh.pop %v770
    %v787 = vtanh.pop %v771
    %v788 = vtanh.pop %v772
    %v789 = vtanh.pop %v773
    %v790 = vtanh.pop %v774
    %v791 = vtanh.pop %v775
    %v792 = vtanh.pop %v776
    %v793 = vtanh.pop %v777
    %v794 = vtanh.pop %v778
    %v795 = vtanh.pop %v779
    %v796 = vadd.f32 %v780, 1.0
    %v797 = vadd.f32 %v781, 1.0
    %v798 = vadd.f32 %v782, 1.0
    %v799 = vadd.f32 %v783, 1.0
    %v800 = vadd.f32 %v784, 1.0
    %v801 = vadd.f32 %v785, 1.0
    %v802 = vadd.f32 %v786, 1.0
    %v803 = vadd.f32 %v787, 1.0
    %v804 = vadd.f32 %v788, 1.0
    %v805 = vadd.f32 %v789, 1.0
    %v806 = vadd.f32 %v790, 1.0
    %v807 = vadd.f32 %v791, 1.0
    %v808 = vadd.f32 %v792, 1.0
    %v809 = vadd.f32 %v793, 1.0
    %v810 = vadd.f32 %v794, 1.0
    %v811 = vadd.f32 %v795, 1.0
    %v812 = vmul.f32 %v796, 0.5
    %v813 = vmul.f32 %v797, 0.5
    %v814 = vmul.f32 %v798, 0.5
    %v815 = vmul.f32 %v799, 0.5
    %v816 = vmul.f32 %v800, 0.5
    %v817 = vmul.f32 %v801, 0.5
    %v818 = vmul.f32 %v802, 0.5
    %v819 = vmul.f32 %v803, 0.5
    %v820 = vmul.f32 %v804, 0.5
    %v821 = vmul.f32 %v805, 0.5
    %v822 = vmul.f32 %v806, 0.5
    %v823 = vmul.f32 %v807, 0.5
    %v824 = vmul.f32 %v808, 0.5
    %v825 = vmul.f32 %v809, 0.5
    %v826 = vmul.f32 %v810, 0.5
    %v827 = vmul.f32 %v811, 0.5
    %v828 = vmul.f32 %v662, %v812
    %v829 = vmul.f32 %v664, %v813
    %v830 = vmul.f32 %v666, %v814
    %v831 = vmul.f32 %v668, %v815
    %v832 = vmul.f32 %v672, %v816
    %v833 = vmul.f32 %v674, %v817
    %v834 = vmul.f32 %v676, %v818
    %v835 = vmul.f32 %v678, %v819
    %v836 = vmul.f32 %v682, %v820
    %v837 = vmul.f32 %v684, %v821
    %v838 = vmul.f32 %v686, %v822
    %v839 = vmul.f32 %v688, %v823
    %v840 = vmul.f32 %v692, %v824
    %v841 = vmul.f32 %v694, %v825
    %v842 = vmul.f32 %v696, %v826
    %v843 = vmul.f32 %v698, %v827
    %v844 = vadd.s32 %v381, 128
    %vm845 = vcmp.ge.s32.totalorder %v381, 0
    %vm846 = vcmp.ge.s32.totalorder %v844, 0
    %vm847 = vcmp.lt.s32.totalorder %v381, 64
    %vm848 = vcmp.lt.s32.totalorder %v844, 64
    %vm849 = vmand %vm845, %vm847
    %vm850 = vmand %vm846, %vm848
    %852 = vset.pattern.permute.xlu0 0
    %853 = vperm.xlu0 %852, %v576
    %v854 = vpop.permute.xlu0 %853
    %857 = vset.pattern.permute.xlu0 0
    %858 = vperm.xlu0 %857, %v578
    %v859 = vpop.permute.xlu0 %858
    %862 = vset.pattern.permute.xlu0 0
    %863 = vperm.xlu0 %862, %v580
    %v864 = vpop.permute.xlu0 %863
    %867 = vset.pattern.permute.xlu0 0
    %868 = vperm.xlu0 %867, %v582
    %v869 = vpop.permute.xlu0 %868
    %872 = vset.pattern.permute.xlu0 0
    %873 = vperm.xlu0 %872, %v584
    %v874 = vpop.permute.xlu0 %873
    %877 = vset.pattern.permute.xlu0 0
    %878 = vperm.xlu0 %877, %v586
    %v879 = vpop.permute.xlu0 %878
    %882 = vset.pattern.permute.xlu0 0
    %883 = vperm.xlu0 %882, %v588
    %v884 = vpop.permute.xlu0 %883
    %887 = vset.pattern.permute.xlu0 0
    %888 = vperm.xlu0 %887, %v590
    %v889 = vpop.permute.xlu0 %888
    %v891 = vsel %vm849, %v854, 0.0
    %v892 = vsel %vm850, %v854, 0.0
    %v893 = vsel %vm849, %v859, 0.0
    %v894 = vsel %vm850, %v859, 0.0
    %v895 = vsel %vm849, %v864, 0.0
    %v896 = vsel %vm850, %v864, 0.0
    %v897 = vsel %vm849, %v869, 0.0
    %v898 = vsel %vm850, %v869, 0.0
    %v899 = vsel %vm849, %v874, 0.0
    %v900 = vsel %vm850, %v874, 0.0
    %v901 = vsel %vm849, %v879, 0.0
    %v902 = vsel %vm850, %v879, 0.0
    %v903 = vsel %vm849, %v884, 0.0
    %v904 = vsel %vm850, %v884, 0.0
    %v905 = vsel %vm849, %v889, 0.0
    %v906 = vsel %vm850, %v889, 0.0
    %vm907 = vcmp.ge.s32.totalorder %v381, 64
    %vm908 = vcmp.ge.s32.totalorder %v844, 64
    %vm909 = vcmp.lt.s32.totalorder %v381, 128
    %vm910 = vcmp.lt.s32.totalorder %v844, 128
    %vm911 = vmand %vm907, %vm909
    %vm912 = vmand %vm908, %vm910
    %913 = vset.pattern.permute.xlu0 1
    %914 = vperm.xlu0 %913, %v576
    %v915 = vpop.permute.xlu0 %914
    %917 = vset.pattern.permute.xlu0 1
    %918 = vperm.xlu0 %917, %v578
    %v919 = vpop.permute.xlu0 %918
    %921 = vset.pattern.permute.xlu0 1
    %922 = vperm.xlu0 %921, %v580
    %v923 = vpop.permute.xlu0 %922
    %925 = vset.pattern.permute.xlu0 1
    %926 = vperm.xlu0 %925, %v582
    %v927 = vpop.permute.xlu0 %926
    %929 = vset.pattern.permute.xlu0 1
    %930 = vperm.xlu0 %929, %v584
    %v931 = vpop.permute.xlu0 %930
    %933 = vset.pattern.permute.xlu0 1
    %934 = vperm.xlu0 %933, %v586
    %v935 = vpop.permute.xlu0 %934
    %937 = vset.pattern.permute.xlu0 1
    %938 = vperm.xlu0 %937, %v588
    %v939 = vpop.permute.xlu0 %938
    %941 = vset.pattern.permute.xlu0 1
    %942 = vperm.xlu0 %941, %v590
    %v943 = vpop.permute.xlu0 %942
    %v945 = vsel %vm911, %v915, %v891
    %v946 = vsel %vm912, %v915, %v892
    %v947 = vsel %vm911, %v919, %v893
    %v948 = vsel %vm912, %v919, %v894
    %v949 = vsel %vm911, %v923, %v895
    %v950 = vsel %vm912, %v923, %v896
    %v951 = vsel %vm911, %v927, %v897
    %v952 = vsel %vm912, %v927, %v898
    %v953 = vsel %vm911, %v931, %v899
    %v954 = vsel %vm912, %v931, %v900
    %v955 = vsel %vm911, %v935, %v901
    %v956 = vsel %vm912, %v935, %v902
    %v957 = vsel %vm911, %v939, %v903
    %v958 = vsel %vm912, %v939, %v904
    %v959 = vsel %vm911, %v943, %v905
    %v960 = vsel %vm912, %v943, %v906
    %vm961 = vcmp.ge.s32.totalorder %v381, 128
    %vm962 = vcmp.ge.s32.totalorder %v844, 128
    %vm963 = vcmp.lt.s32.totalorder %v381, 192
    %vm964 = vcmp.lt.s32.totalorder %v844, 192
    %vm965 = vmand %vm961, %vm963
    %vm966 = vmand %vm962, %vm964
    %967 = vset.pattern.permute.xlu0 2
    %968 = vperm.xlu0 %967, %v576
    %v969 = vpop.permute.xlu0 %968
    %971 = vset.pattern.permute.xlu0 2
    %972 = vperm.xlu0 %971, %v578
    %v973 = vpop.permute.xlu0 %972
    %975 = vset.pattern.permute.xlu0 2
    %976 = vperm.xlu0 %975, %v580
    %v977 = vpop.permute.xlu0 %976
    %979 = vset.pattern.permute.xlu0 2
    %980 = vperm.xlu0 %979, %v582
    %v981 = vpop.permute.xlu0 %980
    %983 = vset.pattern.permute.xlu0 2
    %984 = vperm.xlu0 %983, %v584
    %v985 = vpop.permute.xlu0 %984
    %987 = vset.pattern.permute.xlu0 2
    %988 = vperm.xlu0 %987, %v586
    %v989 = vpop.permute.xlu0 %988
    %991 = vset.pattern.permute.xlu0 2
    %992 = vperm.xlu0 %991, %v588
    %v993 = vpop.permute.xlu0 %992
    %995 = vset.pattern.permute.xlu0 2
    %996 = vperm.xlu0 %995, %v590
    %v997 = vpop.permute.xlu0 %996
    %v999 = vsel %vm965, %v969, %v945
    %v1000 = vsel %vm966, %v969, %v946
    %v1001 = vsel %vm965, %v973, %v947
    %v1002 = vsel %vm966, %v973, %v948
    %v1003 = vsel %vm965, %v977, %v949
    %v1004 = vsel %vm966, %v977, %v950
    %v1005 = vsel %vm965, %v981, %v951
    %v1006 = vsel %vm966, %v981, %v952
    %v1007 = vsel %vm965, %v985, %v953
    %v1008 = vsel %vm966, %v985, %v954
    %v1009 = vsel %vm965, %v989, %v955
    %v1010 = vsel %vm966, %v989, %v956
    %v1011 = vsel %vm965, %v993, %v957
    %v1012 = vsel %vm966, %v993, %v958
    %v1013 = vsel %vm965, %v997, %v959
    %v1014 = vsel %vm966, %v997, %v960
    %vm1015 = vcmp.ge.s32.totalorder %v381, 192
    %vm1016 = vcmp.ge.s32.totalorder %v844, 192
    %vm1017 = vcmp.lt.s32.totalorder %v381, 256
    %vm1018 = vcmp.lt.s32.totalorder %v844, 256
    %vm1019 = vmand %vm1015, %vm1017
    %vm1020 = vmand %vm1016, %vm1018
    %1021 = vset.pattern.permute.xlu0 3
    %1022 = vperm.xlu0 %1021, %v576
    %v1023 = vpop.permute.xlu0 %1022
    %1025 = vset.pattern.permute.xlu0 3
    %1026 = vperm.xlu0 %1025, %v578
    %v1027 = vpop.permute.xlu0 %1026
    %1029 = vset.pattern.permute.xlu0 3
    %1030 = vperm.xlu0 %1029, %v580
    %v1031 = vpop.permute.xlu0 %1030
    %1033 = vset.pattern.permute.xlu0 3
    %1034 = vperm.xlu0 %1033, %v582
    %v1035 = vpop.permute.xlu0 %1034
    %1037 = vset.pattern.permute.xlu0 3
    %1038 = vperm.xlu0 %1037, %v584
    %v1039 = vpop.permute.xlu0 %1038
    %1041 = vset.pattern.permute.xlu0 3
    %1042 = vperm.xlu0 %1041, %v586
    %v1043 = vpop.permute.xlu0 %1042
    %1045 = vset.pattern.permute.xlu0 3
    %1046 = vperm.xlu0 %1045, %v588
    %v1047 = vpop.permute.xlu0 %1046
    %1049 = vset.pattern.permute.xlu0 3
    %1050 = vperm.xlu0 %1049, %v590
    %v1051 = vpop.permute.xlu0 %1050
    %v1053 = vsel %vm1019, %v1023, %v999
    %v1054 = vsel %vm1020, %v1023, %v1000
    %v1055 = vsel %vm1019, %v1027, %v1001
    %v1056 = vsel %vm1020, %v1027, %v1002
    %v1057 = vsel %vm1019, %v1031, %v1003
    %v1058 = vsel %vm1020, %v1031, %v1004
    %v1059 = vsel %vm1019, %v1035, %v1005
    %v1060 = vsel %vm1020, %v1035, %v1006
    %v1061 = vsel %vm1019, %v1039, %v1007
    %v1062 = vsel %vm1020, %v1039, %v1008
    %v1063 = vsel %vm1019, %v1043, %v1009
    %v1064 = vsel %vm1020, %v1043, %v1010
    %v1065 = vsel %vm1019, %v1047, %v1011
    %v1066 = vsel %vm1020, %v1047, %v1012
    %v1067 = vsel %vm1019, %v1051, %v1013
    %v1068 = vsel %vm1020, %v1051, %v1014
    %v1069 = vmul.f32 %v828, %v1053
    %v1070 = vmul.f32 %v829, %v1054
    %v1071 = vmul.f32 %v830, %v1055
    %v1072 = vmul.f32 %v831, %v1056
    %v1073 = vmul.f32 %v832, %v1057
    %v1074 = vmul.f32 %v833, %v1058
    %v1075 = vmul.f32 %v834, %v1059
    %v1076 = vmul.f32 %v835, %v1060
    %v1077 = vmul.f32 %v836, %v1061
    %v1078 = vmul.f32 %v837, %v1062
    %v1079 = vmul.f32 %v838, %v1063
    %v1080 = vmul.f32 %v839, %v1064
    %v1081 = vmul.f32 %v840, %v1065
    %v1082 = vmul.f32 %v841, %v1066
    %v1083 = vmul.f32 %v842, %v1067
    %v1084 = vmul.f32 %v843, %v1068
    %v1085 = vpack.c.bf16 %v1071, %v1069
    %v1086 = vpack.c.bf16 %v1072, %v1070
    %v1087 = vpack.c.bf16 %v1075, %v1073
    %v1088 = vpack.c.bf16 %v1076, %v1074
    %v1089 = vpack.c.bf16 %v1079, %v1077
    %v1090 = vpack.c.bf16 %v1080, %v1078
    %v1091 = vpack.c.bf16 %v1083, %v1081
    %v1092 = vpack.c.bf16 %v1084, %v1082
    %v1093 = vld [vmem:[%s6] sm:$0xf]
    %v1094 = vld [vmem:[%s6 + $0x4] sm:$0xf]
    %v1095 = vld [vmem:[%s6 + $0x8] sm:$0xf]
    %v1096 = vld [vmem:[%s6 + $0xc] sm:$0xf]
    %v1097 = vld [vmem:[%s6 + $0x10] sm:$0xf]
    %v1098 = vld [vmem:[%s6 + $0x14] sm:$0xf]
    %v1099 = vld [vmem:[%s6 + $0x18] sm:$0xf]
    %v1100 = vld [vmem:[%s6 + $0x1c] sm:$0xf]
    %v1101 = vld [vmem:[%s6 + $0x20] sm:$0xf]
    %v1102 = vld [vmem:[%s6 + $0x24] sm:$0xf]
    %v1103 = vld [vmem:[%s6 + $0x28] sm:$0xf]
    %v1104 = vld [vmem:[%s6 + $0x2c] sm:$0xf]
    %v1105 = vld [vmem:[%s6 + $0x30] sm:$0xf]
    %v1106 = vld [vmem:[%s6 + $0x34] sm:$0xf]
    %v1107 = vld [vmem:[%s6 + $0x38] sm:$0xf]
    %v1108 = vld [vmem:[%s6 + $0x3c] sm:$0xf]
    %v1109 = vld [vmem:[%s6 + $0x40] sm:$0xf]
    %v1110 = vld [vmem:[%s6 + $0x44] sm:$0xf]
    %v1111 = vld [vmem:[%s6 + $0x48] sm:$0xf]
    %v1112 = vld [vmem:[%s6 + $0x4c] sm:$0xf]
    %v1113 = vld [vmem:[%s6 + $0x50] sm:$0xf]
    %v1114 = vld [vmem:[%s6 + $0x54] sm:$0xf]
    %v1115 = vld [vmem:[%s6 + $0x58] sm:$0xf]
    %v1116 = vld [vmem:[%s6 + $0x5c] sm:$0xf]
    %v1117 = vld [vmem:[%s6 + $0x60] sm:$0xf]
    %v1118 = vld [vmem:[%s6 + $0x64] sm:$0xf]
    %v1119 = vld [vmem:[%s6 + $0x68] sm:$0xf]
    %v1120 = vld [vmem:[%s6 + $0x6c] sm:$0xf]
    %v1121 = vld [vmem:[%s6 + $0x70] sm:$0xf]
    %v1122 = vld [vmem:[%s6 + $0x74] sm:$0xf]
    %v1123 = vld [vmem:[%s6 + $0x78] sm:$0xf]
    %v1124 = vld [vmem:[%s6 + $0x7c] sm:$0xf]
    %v1125 = vld [vmem:[%s7] sm:$0xf]
    %v1126 = vsel %vm291, %v576, 0
    %v1128 = vsel %vm291, %v578, 0
    %v1130 = vsel %vm291, %v580, 0
    %v1132 = vsel %vm291, %v582, 0
    %v1134 = vsel %vm291, %v584, 0
    %v1136 = vsel %vm291, %v586, 0
    %v1138 = vsel %vm291, %v588, 0
    %v1140 = vsel %vm291, %v590, 0
    %vm1142 = vcmask 1043456
    %v1144 = vsel %vm1142, %v1125, 0
    %1146 = vmatprep.subr.mxu0 0.0
    %1147 = vmatpush1.msra.mxu0 %v1144
    %1148 = vmatprep.subr.mxu0 0.0
    %1149 = vmatpush1.msra.mxu0 0.0
    %1150 = vmatprep.subr.mxu0 0.0
    %1151 = vmatpush1.msra.mxu0 0.0
    %1152 = vmatprep.subr.mxu0 0.0
    %1153 = vmatpush1.msra.mxu0 0.0
    %1154 = vmatprep.subr.mxu0 0.0
    %1155 = vmatpush1.msra.mxu0 0.0
    %1156 = vmatprep.subr.mxu0 0.0
    %1157 = vmatpush1.msra.mxu0 0.0
    %1158 = vmatprep.subr.mxu0 0.0
    %1159 = vmatpush1.msra.mxu0 0.0
    %1160 = vmatprep.subr.mxu0 0.0
    %1161 = vmatpush1.msra.mxu0 0.0
    %1162 = vmatprep.subr.mxu0 0.0
    %1163 = vmatpush1.msra.mxu0 0.0
    %1164 = vmatprep.subr.mxu0 0.0
    %1165 = vmatpush1.msra.mxu0 0.0
    %1166 = vmatprep.subr.mxu0 0.0
    %1167 = vmatpush1.msra.mxu0 0.0
    %1168 = vmatprep.subr.mxu0 0.0
    %1169 = vmatpush1.msra.mxu0 0.0
    %1170 = vmatprep.subr.mxu0 0.0
    %1171 = vmatpush1.msra.mxu0 0.0
    %1172 = vmatprep.subr.mxu0 0.0
    %1173 = vmatpush1.msra.mxu0 0.0
    %1174 = vmatprep.subr.mxu0 0.0
    %1175 = vmatpush1.msra.mxu0 0.0
    %1176 = vmatprep.subr.mxu0 0.0
    %1177 = vmatpush1.msra.mxu0 0.0
    %1178 = vmatprep.subr.mxu0 0.0
    %1179 = vmatpush1.msra.mxu0 0.0
    %1180 = vmatprep.subr.mxu0 0.0
    %1181 = vmatpush1.msra.mxu0 0.0
    %1182 = vmatprep.subr.mxu0 0.0
    %1183 = vmatpush1.msra.mxu0 0.0
    %1184 = vmatprep.subr.mxu0 0.0
    %1185 = vmatpush1.msra.mxu0 0.0
    %1186 = vmatprep.subr.mxu0 0.0
    %1187 = vmatpush1.msra.mxu0 0.0
    %1188 = vmatprep.subr.mxu0 0.0
    %1189 = vmatpush1.msra.mxu0 0.0
    %1190 = vmatprep.subr.mxu0 0.0
    %1191 = vmatpush1.msra.mxu0 0.0
    %1192 = vmatprep.subr.mxu0 0.0
    %1193 = vmatpush1.msra.mxu0 0.0
    %1194 = vmatprep.subr.mxu0 0.0
    %1195 = vmatpush1.msra.mxu0 0.0
    %1196 = vmatprep.subr.mxu0 0.0
    %1197 = vmatpush1.msra.mxu0 0.0
    %1198 = vmatprep.subr.mxu0 0.0
    %1199 = vmatpush1.msra.mxu0 0.0
    %1200 = vmatprep.subr.mxu0 0.0
    %1201 = vmatpush1.msra.mxu0 0.0
    %1202 = vmatprep.subr.mxu0 0.0
    %1203 = vmatpush1.msra.mxu0 0.0
    %1204 = vmatprep.subr.mxu0 0.0
    %1205 = vmatpush1.msra.mxu0 0.0
    %1206 = vmatprep.subr.mxu0 0.0
    %1207 = vmatpush1.msra.mxu0 0.0
    %1208 = vmatprep.subr.mxu0 0.0
    %1209 = vmatpush1.msra.mxu0 0.0
    %1210 = vmatprep.mubr.f32.mxu0 0.0
    %1211 = vmatmul.mubr.f32.gmra.mrb[0].mxu0 %v1126
    %v1212 = vpop.f32.mrb[0].mxu0
    %v1213 = vadd.f32 0.0, %v1212
    %v1214 = vpop.f32.mrb[0].mxu0
    %1215 = vmatprep.mubr.f32.mxu0 0.0
    %1216 = vmatmul.mubr.f32.gmra.mrb[0].mxu0 %v1128
    %v1217 = vpop.f32.mrb[0].mxu0
    %v1218 = vadd.f32 0.0, %v1217
    %v1219 = vpop.f32.mrb[0].mxu0
    %1220 = vmatprep.mubr.f32.mxu0 0.0
    %1221 = vmatmul.mubr.f32.gmra.mrb[0].mxu0 %v1130
    %v1222 = vpop.f32.mrb[0].mxu0
    %v1223 = vadd.f32 0.0, %v1222
    %v1224 = vpop.f32.mrb[0].mxu0
    %1225 = vmatprep.mubr.f32.mxu0 0.0
    %1226 = vmatmul.mubr.f32.gmra.mrb[0].mxu0 %v1132
    %v1227 = vpop.f32.mrb[0].mxu0
    %v1228 = vadd.f32 0.0, %v1227
    %v1229 = vpop.f32.mrb[0].mxu0
    %1230 = vmatprep.mubr.f32.mxu0 0.0
    %1231 = vmatmul.mubr.f32.gmra.mrb[0].mxu0 %v1134
    %v1232 = vpop.f32.mrb[0].mxu0
    %v1233 = vadd.f32 0.0, %v1232
    %v1234 = vpop.f32.mrb[0].mxu0
    %1235 = vmatprep.mubr.f32.mxu0 0.0
    %1236 = vmatmul.mubr.f32.gmra.mrb[0].mxu0 %v1136
    %v1237 = vpop.f32.mrb[0].mxu0
    %v1238 = vadd.f32 0.0, %v1237
    %v1239 = vpop.f32.mrb[0].mxu0
    %1240 = vmatprep.mubr.f32.mxu0 0.0
    %1241 = vmatmul.mubr.f32.gmra.mrb[0].mxu0 %v1138
    %v1242 = vpop.f32.mrb[0].mxu0
    %v1243 = vadd.f32 0.0, %v1242
    %v1244 = vpop.f32.mrb[0].mxu0
    %1245 = vmatprep.mubr.f32.mxu0 0.0
    %1246 = vmatmul.mubr.f32.gmra.mrb[0].mxu0 %v1140
    %v1247 = vpop.f32.mrb[0].mxu0
    %v1248 = vadd.f32 0.0, %v1247
    %v1249 = vpop.f32.mrb[0].mxu0
    %1250 = vdwg.mxu0
    %v1283 = vunpack.c.l.b16 %v1093
    %v1284 = vunpack.c.l.b16 %v1094
    %v1285 = vunpack.c.l.b16 %v1095
    %v1286 = vunpack.c.l.b16 %v1096
    %v1287 = vunpack.c.l.b16 %v1097
    %v1288 = vunpack.c.l.b16 %v1098
    %v1289 = vunpack.c.l.b16 %v1099
    %v1290 = vunpack.c.l.b16 %v1100
    %v1291 = vunpack.c.l.b16 %v1101
    %v1292 = vunpack.c.l.b16 %v1102
    %v1293 = vunpack.c.l.b16 %v1103
    %v1294 = vunpack.c.l.b16 %v1104
    %v1295 = vunpack.c.l.b16 %v1105
    %v1296 = vunpack.c.l.b16 %v1106
    %v1297 = vunpack.c.l.b16 %v1107
    %v1298 = vunpack.c.l.b16 %v1108
    %v1299 = vunpack.c.l.b16 %v1109
    %v1300 = vunpack.c.l.b16 %v1110
    %v1301 = vunpack.c.l.b16 %v1111
    %v1302 = vunpack.c.l.b16 %v1112
    %v1303 = vunpack.c.l.b16 %v1113
    %v1304 = vunpack.c.l.b16 %v1114
    %v1305 = vunpack.c.l.b16 %v1115
    %v1306 = vunpack.c.l.b16 %v1116
    %v1307 = vunpack.c.l.b16 %v1117
    %v1308 = vunpack.c.l.b16 %v1118
    %v1309 = vunpack.c.l.b16 %v1119
    %v1310 = vunpack.c.l.b16 %v1120
    %v1311 = vunpack.c.l.b16 %v1121
    %v1312 = vunpack.c.l.b16 %v1122
    %v1313 = vunpack.c.l.b16 %v1123
    %v1314 = vunpack.c.l.b16 %v1124
    %v1315 = vpack.c.b16 %v1284, %v1283
    %v1316 = vpack.c.b16 %v1286, %v1285
    %v1317 = vpack.c.b16 %v1288, %v1287
    %v1318 = vpack.c.b16 %v1290, %v1289
    %v1319 = vpack.c.b16 %v1292, %v1291
    %v1320 = vpack.c.b16 %v1294, %v1293
    %v1321 = vpack.c.b16 %v1296, %v1295
    %v1322 = vpack.c.b16 %v1298, %v1297
    %v1323 = vpack.c.b16 %v1300, %v1299
    %v1324 = vpack.c.b16 %v1302, %v1301
    %v1325 = vpack.c.b16 %v1304, %v1303
    %v1326 = vpack.c.b16 %v1306, %v1305
    %v1327 = vpack.c.b16 %v1308, %v1307
    %v1328 = vpack.c.b16 %v1310, %v1309
    %v1329 = vpack.c.b16 %v1312, %v1311
    %v1330 = vpack.c.b16 %v1314, %v1313
    %1347 = vmatprep.subr.bf16.mxu0 0
    %1348 = vmatpush1.bf16.msra.mxu0 %v1315
    %1349 = vmatprep.subr.bf16.mxu0 0
    %1350 = vmatpush1.bf16.msra.mxu0 %v1316
    %1351 = vmatprep.subr.bf16.mxu0 0
    %1352 = vmatpush1.bf16.msra.mxu0 %v1317
    %1353 = vmatprep.subr.bf16.mxu0 0
    %1354 = vmatpush1.bf16.msra.mxu0 %v1318
    %1355 = vmatprep.subr.bf16.mxu0 0
    %1356 = vmatpush1.bf16.msra.mxu0 %v1319
    %1357 = vmatprep.subr.bf16.mxu0 0
    %1358 = vmatpush1.bf16.msra.mxu0 %v1320
    %1359 = vmatprep.subr.bf16.mxu0 0
    %1360 = vmatpush1.bf16.msra.mxu0 %v1321
    %1361 = vmatprep.subr.bf16.mxu0 0
    %1362 = vmatpush1.bf16.msra.mxu0 %v1322
    %1363 = vmatprep.subr.bf16.mxu0 0
    %1364 = vmatpush1.bf16.msra.mxu0 %v1323
    %1365 = vmatprep.subr.bf16.mxu0 0
    %1366 = vmatpush1.bf16.msra.mxu0 %v1324
    %1367 = vmatprep.subr.bf16.mxu0 0
    %1368 = vmatpush1.bf16.msra.mxu0 %v1325
    %1369 = vmatprep.subr.bf16.mxu0 0
    %1370 = vmatpush1.bf16.msra.mxu0 %v1326
    %1371 = vmatprep.subr.bf16.mxu0 0
    %1372 = vmatpush1.bf16.msra.mxu0 %v1327
    %1373 = vmatprep.subr.bf16.mxu0 0
    %1374 = vmatpush1.bf16.msra.mxu0 %v1328
    %1375 = vmatprep.subr.bf16.mxu0 0
    %1376 = vmatpush1.bf16.msra.mxu0 %v1329
    %1377 = vmatprep.subr.bf16.mxu0 0
    %1378 = vmatpush1.bf16.msra.mxu0 %v1330
    %1379 = vmatprep.mubr.bf16.mxu0 %v1086
    %1380 = vmatmul.mubr.bf16.gmra.mrb[0].mxu0 %v1085
    %v1381 = vpop.f32.mrb[0].mxu0
    %v1382 = vadd.f32 %v1213, %v1381
    %v1383 = vpop.f32.mrb[0].mxu0
    %v1384 = vpop.f32.mrb[0].mxu0
    %v1385 = vadd.f32 %v1218, %v1384
    %v1386 = vpop.f32.mrb[0].mxu0
    %1387 = vmatprep.mubr.bf16.mxu0 %v1088
    %1388 = vmatmul.mubr.bf16.gmra.mrb[0].mxu0 %v1087
    %v1389 = vpop.f32.mrb[0].mxu0
    %v1390 = vadd.f32 %v1223, %v1389
    %v1391 = vpop.f32.mrb[0].mxu0
    %v1392 = vpop.f32.mrb[0].mxu0
    %v1393 = vadd.f32 %v1228, %v1392
    %v1394 = vpop.f32.mrb[0].mxu0
    %1395 = vmatprep.mubr.bf16.mxu0 %v1090
    %1396 = vmatmul.mubr.bf16.gmra.mrb[0].mxu0 %v1089
    %v1397 = vpop.f32.mrb[0].mxu0
    %v1398 = vadd.f32 %v1233, %v1397
    %v1399 = vpop.f32.mrb[0].mxu0
    %v1400 = vpop.f32.mrb[0].mxu0
    %v1401 = vadd.f32 %v1238, %v1400
    %v1402 = vpop.f32.mrb[0].mxu0
    %1403 = vmatprep.mubr.bf16.mxu0 %v1092
    %1404 = vmatmul.mubr.bf16.gmra.mrb[0].mxu0 %v1091
    %v1405 = vpop.f32.mrb[0].mxu0
    %v1406 = vadd.f32 %v1243, %v1405
    %v1407 = vpop.f32.mrb[0].mxu0
    %v1408 = vpop.f32.mrb[0].mxu0
    %v1409 = vadd.f32 %v1248, %v1408
    %v1410 = vpop.f32.mrb[0].mxu0
    %1411 = vdwg.mxu0
    %1412 = vst.msk [vmem:[#allocation2] sm:$0xff] %vm213, %v1382
    %1414 = vrot.lane.b32.xlu0 %v1385, 32
    %v1415 = vpop.permute.xlu0 %1414
    %vm1417 = vcmask 523520
    %1418 = vst.msk [vmem:[#allocation2] sm:$0xff] %vm1417, %v1415
    %1420 = vrot.lane.b32.xlu0 %v1390, 64
    %v1421 = vpop.permute.xlu0 %1420
    %vm1423 = vcmask 785920
    %1424 = vst.msk [vmem:[#allocation2] sm:$0xff] %vm1423, %v1421
    %1426 = vrot.lane.b32.xlu0 %v1393, 96
    %v1427 = vpop.permute.xlu0 %1426
    %vm1429 = vcmask 1048320
    %1430 = vst.msk [vmem:[#allocation2] sm:$0xff] %vm1429, %v1427
    %1431 = vst.msk [vmem:[#allocation2 + $0x8] sm:$0xff] %vm213, %v1398
    %1433 = vrot.lane.b32.xlu0 %v1401, 32
    %v1434 = vpop.permute.xlu0 %1433
    %1436 = vst.msk [vmem:[#allocation2 + $0x8] sm:$0xff] %vm1417, %v1434
    %1438 = vrot.lane.b32.xlu0 %v1406, 64
    %v1439 = vpop.permute.xlu0 %1438
    %1441 = vst.msk [vmem:[#allocation2 + $0x8] sm:$0xff] %vm1423, %v1439
    %1443 = vrot.lane.b32.xlu0 %v1409, 96
    %v1444 = vpop.permute.xlu0 %1443
    %1446 = vst.msk [vmem:[#allocation2 + $0x8] sm:$0xff] %vm1429, %v1444
    %v1447 = vld [vmem:[#allocation2] sm:$0xff]
    %v1448 = vld [vmem:[#allocation2 + $0x8] sm:$0xff]
    %v1449 = vpack.c.bf16 %v1447, %v1447
    %v1450 = vpack.c.bf16 %v1448, %v1448
    %v1451 = vld [vmem:[%s8] sm:$0xf]
    %v1452 = vld [vmem:[%s8 + $0x4] sm:$0xf]
    %v1453 = vld [vmem:[%s8 + $0x8] sm:$0xf]
    %v1454 = vld [vmem:[%s8 + $0xc] sm:$0xf]
    %v1455 = vld [vmem:[%s8 + $0x10] sm:$0xf]
    %v1456 = vld [vmem:[%s8 + $0x14] sm:$0xf]
    %v1457 = vld [vmem:[%s8 + $0x18] sm:$0xf]
    %v1458 = vld [vmem:[%s8 + $0x1c] sm:$0xf]
    %v1459 = vld [vmem:[%s8 + $0x20] sm:$0xf]
    %v1460 = vld [vmem:[%s8 + $0x24] sm:$0xf]
    %v1461 = vld [vmem:[%s8 + $0x28] sm:$0xf]
    %v1462 = vld [vmem:[%s8 + $0x2c] sm:$0xf]
    %v1463 = vld [vmem:[%s8 + $0x30] sm:$0xf]
    %v1464 = vld [vmem:[%s8 + $0x34] sm:$0xf]
    %v1465 = vld [vmem:[%s8 + $0x38] sm:$0xf]
    %v1466 = vld [vmem:[%s8 + $0x3c] sm:$0xf]
    %v1467 = vld [vmem:[%s8 + $0x40] sm:$0xf]
    %v1468 = vld [vmem:[%s8 + $0x44] sm:$0xf]
    %v1469 = vld [vmem:[%s8 + $0x48] sm:$0xf]
    %v1470 = vld [vmem:[%s8 + $0x4c] sm:$0xf]
    %v1471 = vld [vmem:[%s8 + $0x50] sm:$0xf]
    %v1472 = vld [vmem:[%s8 + $0x54] sm:$0xf]
    %v1473 = vld [vmem:[%s8 + $0x58] sm:$0xf]
    %v1474 = vld [vmem:[%s8 + $0x5c] sm:$0xf]
    %v1475 = vld [vmem:[%s8 + $0x60] sm:$0xf]
    %v1476 = vld [vmem:[%s8 + $0x64] sm:$0xf]
    %v1477 = vld [vmem:[%s8 + $0x68] sm:$0xf]
    %v1478 = vld [vmem:[%s8 + $0x6c] sm:$0xf]
    %v1479 = vld [vmem:[%s8 + $0x70] sm:$0xf]
    %v1480 = vld [vmem:[%s8 + $0x74] sm:$0xf]
    %v1481 = vld [vmem:[%s8 + $0x78] sm:$0xf]
    %v1482 = vld [vmem:[%s8 + $0x7c] sm:$0xf]
    %v1483 = vld [vmem:[%s9] sm:$0x1]
    %v1485 = vlaneseq
    %v1486 = vshrl.u32 %v1485, 7
    %v1487 = vsub.s32 0, %v1486
    %v1488 = vrot.slane %v1483, %v1487
    %v1522 = vunpack.c.l.b16 %v1451
    %v1523 = vunpack.c.l.b16 %v1452
    %v1524 = vunpack.c.l.b16 %v1453
    %v1525 = vunpack.c.l.b16 %v1454
    %v1526 = vunpack.c.l.b16 %v1455
    %v1527 = vunpack.c.l.b16 %v1456
    %v1528 = vunpack.c.l.b16 %v1457
    %v1529 = vunpack.c.l.b16 %v1458
    %v1530 = vunpack.c.l.b16 %v1459
    %v1531 = vunpack.c.l.b16 %v1460
    %v1532 = vunpack.c.l.b16 %v1461
    %v1533 = vunpack.c.l.b16 %v1462
    %v1534 = vunpack.c.l.b16 %v1463
    %v1535 = vunpack.c.l.b16 %v1464
    %v1536 = vunpack.c.l.b16 %v1465
    %v1537 = vunpack.c.l.b16 %v1466
    %v1538 = vunpack.c.l.b16 %v1467
    %v1539 = vunpack.c.l.b16 %v1468
    %v1540 = vunpack.c.l.b16 %v1469
    %v1541 = vunpack.c.l.b16 %v1470
    %v1542 = vunpack.c.l.b16 %v1471
    %v1543 = vunpack.c.l.b16 %v1472
    %v1544 = vunpack.c.l.b16 %v1473
    %v1545 = vunpack.c.l.b16 %v1474
    %v1546 = vunpack.c.l.b16 %v1475
    %v1547 = vunpack.c.l.b16 %v1476
    %v1548 = vunpack.c.l.b16 %v1477
    %v1549 = vunpack.c.l.b16 %v1478
    %v1550 = vunpack.c.l.b16 %v1479
    %v1551 = vunpack.c.l.b16 %v1480
    %v1552 = vunpack.c.l.b16 %v1481
    %v1553 = vunpack.c.l.b16 %v1482
    %v1554 = vpack.c.b16 %v1523, %v1522
    %v1555 = vpack.c.b16 %v1525, %v1524
    %v1556 = vpack.c.b16 %v1527, %v1526
    %v1557 = vpack.c.b16 %v1529, %v1528
    %v1558 = vpack.c.b16 %v1531, %v1530
    %v1559 = vpack.c.b16 %v1533, %v1532
    %v1560 = vpack.c.b16 %v1535, %v1534
    %v1561 = vpack.c.b16 %v1537, %v1536
    %v1562 = vpack.c.b16 %v1539, %v1538
    %v1563 = vpack.c.b16 %v1541, %v1540
    %v1564 = vpack.c.b16 %v1543, %v1542
    %v1565 = vpack.c.b16 %v1545, %v1544
    %v1566 = vpack.c.b16 %v1547, %v1546
    %v1567 = vpack.c.b16 %v1549, %v1548
    %v1568 = vpack.c.b16 %v1551, %v1550
    %v1569 = vpack.c.b16 %v1553, %v1552
    %1586 = vmatprep.subr.bf16.mxu0 0
    %1587 = vmatpush1.bf16.msra.mxu0 %v1554
    %1588 = vmatprep.subr.bf16.mxu0 0
    %1589 = vmatpush1.bf16.msra.mxu0 %v1555
    %1590 = vmatprep.subr.bf16.mxu0 0
    %1591 = vmatpush1.bf16.msra.mxu0 %v1556
    %1592 = vmatprep.subr.bf16.mxu0 0
    %1593 = vmatpush1.bf16.msra.mxu0 %v1557
    %1594 = vmatprep.subr.bf16.mxu0 0
    %1595 = vmatpush1.bf16.msra.mxu0 %v1558
    %1596 = vmatprep.subr.bf16.mxu0 0
    %1597 = vmatpush1.bf16.msra.mxu0 %v1559
    %1598 = vmatprep.subr.bf16.mxu0 0
    %1599 = vmatpush1.bf16.msra.mxu0 %v1560
    %1600 = vmatprep.subr.bf16.mxu0 0
    %1601 = vmatpush1.bf16.msra.mxu0 %v1561
    %1602 = vmatprep.subr.bf16.mxu0 0
    %1603 = vmatpush1.bf16.msra.mxu0 %v1562
    %1604 = vmatprep.subr.bf16.mxu0 0
    %1605 = vmatpush1.bf16.msra.mxu0 %v1563
    %1606 = vmatprep.subr.bf16.mxu0 0
    %1607 = vmatpush1.bf16.msra.mxu0 %v1564
    %1608 = vmatprep.subr.bf16.mxu0 0
    %1609 = vmatpush1.bf16.msra.mxu0 %v1565
    %1610 = vmatprep.subr.bf16.mxu0 0
    %1611 = vmatpush1.bf16.msra.mxu0 %v1566
    %1612 = vmatprep.subr.bf16.mxu0 0
    %1613 = vmatpush1.bf16.msra.mxu0 %v1567
    %1614 = vmatprep.subr.bf16.mxu0 0
    %1615 = vmatpush1.bf16.msra.mxu0 %v1568
    %1616 = vmatprep.subr.bf16.mxu0 0
    %1617 = vmatpush1.bf16.msra.mxu0 %v1569
    %1618 = vmatprep.mubr.bf16.mxu0 %v1450
    %1619 = vmatmul.mubr.bf16.gmra.mrb[0].mxu0 %v1449
    %v1620 = vpop.f32.mrb[0].mxu0
    %v1621 = vadd.f32 %v1488, %v1620
    %v1622 = vpop.f32.mrb[0].mxu0
    %v1623 = vpop.f32.mrb[0].mxu0
    %v1624 = vpop.f32.mrb[0].mxu0
    %1625 = vdwg.mxu0
    %1626 = vst.msk [vmem:[%s10] sm:$0xff] %vm115, %v1621
    %v1627 = vsel %vm447, 1, 0
    %v1628 = vsel %vm448, 1, 0
    %v1629 = vsel %vm449, 1, 0
    %v1630 = vsel %vm450, 1, 0
    %v1631 = vsel %vm451, 1, 0
    %v1632 = vsel %vm452, 1, 0
    %v1633 = vsel %vm453, 1, 0
    %v1634 = vsel %vm454, 1, 0
    %v1635 = vcvt.s32.f32 %v1627
    %v1636 = vcvt.s32.f32 %v1628
    %v1637 = vcvt.s32.f32 %v1629
    %v1638 = vcvt.s32.f32 %v1630
    %v1639 = vcvt.s32.f32 %v1631
    %v1640 = vcvt.s32.f32 %v1632
    %v1641 = vcvt.s32.f32 %v1633
    %v1642 = vcvt.s32.f32 %v1634
    %v1643 = vsel %vm291, %v1635, 0.0
    %v1644 = vsel %vm291, %v1636, 0.0
    %v1645 = vadd.f32 %v1643, %v1644
    %v1646 = vsel %vm291, %v1637, 0.0
    %v1647 = vadd.f32 %v1645, %v1646
    %v1648 = vsel %vm291, %v1638, 0.0
    %v1649 = vadd.f32 %v1647, %v1648
    %v1650 = vsel %vm291, %v1639, 0.0
    %v1651 = vadd.f32 %v1649, %v1650
    %v1652 = vsel %vm291, %v1640, 0.0
    %v1653 = vadd.f32 %v1651, %v1652
    %v1654 = vsel %vm291, %v1641, 0.0
    %v1655 = vadd.f32 %v1653, %v1654
    %v1656 = vsel %vm291, %v1642, 0.0
    %v1657 = vadd.f32 %v1655, %v1656
    %v1658 = vrot.slane %v1657, 4
    %v1659 = vadd.f32 %v1657, %v1658
    %v1660 = vrot.slane %v1659, 2
    %v1661 = vadd.f32 %v1659, %v1660
    %v1662 = vrot.slane %v1661, 1
    %v1663 = vadd.f32 %v1661, %v1662
    %v1664 = vmul.f32 %v1663, 0.015625
    %v1665 = vsel %vm291, %v372, 0.0
    %v1666 = vsel %vm291, %v373, 0.0
    %v1667 = vadd.f32 %v1665, %v1666
    %v1668 = vsel %vm291, %v374, 0.0
    %v1669 = vadd.f32 %v1667, %v1668
    %v1670 = vsel %vm291, %v375, 0.0
    %v1671 = vadd.f32 %v1669, %v1670
    %v1672 = vsel %vm291, %v376, 0.0
    %v1673 = vadd.f32 %v1671, %v1672
    %v1674 = vsel %vm291, %v377, 0.0
    %v1675 = vadd.f32 %v1673, %v1674
    %v1676 = vsel %vm291, %v378, 0.0
    %v1677 = vadd.f32 %v1675, %v1676
    %v1678 = vsel %vm291, %v379, 0.0
    %v1679 = vadd.f32 %v1677, %v1678
    %v1680 = vrot.slane %v1679, 4
    %v1681 = vadd.f32 %v1679, %v1680
    %v1682 = vrot.slane %v1681, 2
    %v1683 = vadd.f32 %v1681, %v1682
    %v1684 = vrot.slane %v1683, 1
    %v1685 = vadd.f32 %v1683, %v1684
    %v1686 = vmul.f32 %v1685, 0.015625
    %v1687 = vmul.f32 %v1664, %v1686
    %v1688 = vsel %vm291, %v1687, 0.0
    %1689 = vadd.xlane.f32.xlu0 %v1688
    %v1690 = vpop.xlane.xlu0 %1689
    %v1691 = vmul.f32 %v1690, 0.04
    %v1692 = vlog2.pop %v342
    %v1693 = vmul.f32 %v1692, 0.6931472
    %v1694 = vlog2.pop %v345
    %v1695 = vmul.f32 %v1694, 0.6931472
    %v1696 = vlog2.pop %v348
    %v1697 = vmul.f32 %v1696, 0.6931472
    %v1698 = vlog2.pop %v351
    %v1699 = vmul.f32 %v1698, 0.6931472
    %v1700 = vlog2.pop %v354
    %v1701 = vmul.f32 %v1700, 0.6931472
    %v1702 = vlog2.pop %v357
    %v1703 = vmul.f32 %v1702, 0.6931472
    %v1704 = vlog2.pop %v360
    %v1705 = vmul.f32 %v1704, 0.6931472
    %v1706 = vlog2.pop %v363
    %v1707 = vmul.f32 %v1706, 0.6931472
    %v1708 = vadd.f32 %v294, %v1693
    %v1709 = vadd.f32 %v297, %v1695
    %v1710 = vadd.f32 %v300, %v1697
    %v1711 = vadd.f32 %v303, %v1699
    %v1712 = vadd.f32 %v306, %v1701
    %v1713 = vadd.f32 %v309, %v1703
    %v1714 = vadd.f32 %v312, %v1705
    %v1715 = vadd.f32 %v315, %v1707
    %v1716 = vmul.f32 %v1708, %v1708
    %v1717 = vmul.f32 %v1709, %v1709
    %v1718 = vmul.f32 %v1710, %v1710
    %v1719 = vmul.f32 %v1711, %v1711
    %v1720 = vmul.f32 %v1712, %v1712
    %v1721 = vmul.f32 %v1713, %v1713
    %v1722 = vmul.f32 %v1714, %v1714
    %v1723 = vmul.f32 %v1715, %v1715
    %v1724 = vadd.f32 %v1716, %v1717
    %v1725 = vadd.f32 %v1724, %v1718
    %v1726 = vadd.f32 %v1725, %v1719
    %v1727 = vadd.f32 %v1726, %v1720
    %v1728 = vadd.f32 %v1727, %v1721
    %v1729 = vadd.f32 %v1728, %v1722
    %v1730 = vadd.f32 %v1729, %v1723
    %v1731 = vrot.slane %v1730, 4
    %v1732 = vadd.f32 %v1730, %v1731
    %v1733 = vrot.slane %v1732, 2
    %v1734 = vadd.f32 %v1732, %v1733
    %v1735 = vrot.slane %v1734, 1
    %v1736 = vadd.f32 %v1734, %v1735
    %v1737 = vmul.f32 %v1736, 1.5625e-05
    %v1738 = vadd.f32 %v1691, %v1737
    %vm1739 = vcmask 0
    %1740 = vst.msk [vmem:[#allocation3] sm:$0x1] %vm1739, %v1738
    // Predicated region
    $region42: #{_lambda_.1} parent=1 // pred_check
      _
    $region43: #{_lambda_.1} parent=1 // pred_check_branch
      %1742 = sbr.rel (0) target = $region45
    $region44: #{_lambda_.1} parent=1 // pred_region
      _
    $region45: #{_lambda_.1} parent=1 // pred_fallthru
      _
    // Predicated region
    $region46: #{_lambda_.1} parent=1 // pred_check
      _
    $region47: #{_lambda_.1} parent=1 // pred_check_branch
      %1744 = sbr.rel (0) target = $region49
    $region48: #{_lambda_.1} parent=1 // pred_region
      %s1746 = ssub.s32 16, 16
      %1747 = vsyncadd [#allocation4], %s1746
      %s1749 = sshll.u32 [#allocation3], 4
      %s1750 = int_to_ptr.vmem [resolvable:$true] %s1749
      %1752 = dma.vmem_to_hbm [thread:$0]  %s1750, 16, %s11, [#allocation4]
    $region49: #{_lambda_.1} parent=1 // pred_fallthru
      _
    // Predicated region
    $region50: #{_lambda_.1} parent=1 // pred_check
      _
    $region51: #{_lambda_.1} parent=1 // pred_check_branch
      %1754 = sbr.rel (0) target = $region53
    $region52: #{_lambda_.1} parent=1 // pred_region
      _
    $region53: #{_lambda_.1} parent=1 // pred_fallthru
      _
    // Predicated region
    $region54: #{_lambda_.1} parent=1 // pred_check
      _
    $region55: #{_lambda_.1} parent=1 // pred_check_branch
      %1756 = sbr.rel (0) target = $region57
    $region56: #{_lambda_.1} parent=1 // pred_region
      %1757 = dma.done [#allocation4], 16
    $region57: #{_lambda_.1} parent=1 // pred_fallthru
      _
    %1758 = vsyncpa [#allocation4], 1

</llo_original>
